<compile_context>
chip_gen: v7x
topology: tpu7x:2x2x1
jax: 0.10.0
libtpu: 0.0.40
codegen_flags: <defaults>
</compile_context>

<pallas_src>
import functools

import jax
import jax.numpy as jnp
import numpy as np
from jax import lax
from jax.experimental import pallas as pl
from jax.experimental.pallas import tpu as pltpu

NEG_SLOPE = 0.01  # nn.LeakyReLU() default negative_slope


# ---------------------------------------------------------------------------
# pltpu.roll direction probe (tiny one-off kernel, run once per process).
# Note: the probe and the main kernel run on the same backend in this process,
# so the cached convention cannot drift; the concat fallback only guards
# against an inconclusive probe.
# ---------------------------------------------------------------------------
_ROLL_MODE = None


def _probe_roll_convention():
    """Determine pltpu.roll's shift direction on this backend.

    Returns "roll_jnp" if pltpu.roll(x, s)[i] == x[(i - s) % n]  (jnp.roll-like),
            "roll_rev" if pltpu.roll(x, s)[i] == x[(i + s) % n],
            "concat"   (slice+concat fallback) if the probe is inconclusive.
    """
    def _kernel(x_ref, o_ref):
        o_ref[...] = pltpu.roll(x_ref[...], shift=1, axis=1)

    x = jnp.broadcast_to(jnp.arange(128, dtype=jnp.float32)[None, :], (8, 128))
    try:
        out = pl.pallas_call(
            _kernel, out_shape=jax.ShapeDtypeStruct((8, 128), jnp.float32))(x)
        v = float(np.asarray(jax.device_get(out))[0, 0])
    except Exception:
        return "concat"
    if v == 127.0:
        return "roll_jnp"
    if v == 1.0:
        return "roll_rev"
    return "concat"


def _roll_mode():
    global _ROLL_MODE
    if _ROLL_MODE is None:
        _ROLL_MODE = _probe_roll_convention()
    return _ROLL_MODE


def _make_shift_fn(mode, hw):
    """Returns shift(t, d) with t: (C, hw); result[:, p] == t[:, p + d] for all
    valid 0 <= p + d < hw.  Positions that wrap around are garbage and are
    always zeroed by the hoisted 3x3 boundary masks in the caller."""
    if mode == "roll_jnp":
        def shift(t, d):
            return pltpu.roll(t, shift=(-d) % hw, axis=1)
    elif mode == "roll_rev":
        def shift(t, d):
            return pltpu.roll(t, shift=d % hw, axis=1)
    else:  # unambiguous (slightly slower) fallback: lane slice + concat zeros
        def shift(t, d):
            c = t.shape[0]
            if d > 0:
                return jnp.concatenate(
                    [t[:, d:], jnp.zeros((c, d), t.dtype)], axis=1)
            return jnp.concatenate(
                [jnp.zeros((c, -d), t.dtype), t[:, :hw + d]], axis=1)
    return shift


# ---------------------------------------------------------------------------
# Pallas kernel
# ---------------------------------------------------------------------------
def up_block_kernel(x_ref, prev_ref, rep_ref,
                    w11_ref, b11_ref, w12_ref, b12_ref,
                    w21_ref, b21_ref, w22_ref, b22_ref,
                    out_ref, *, H, W, shift_mode, tap_dtype):
    HW = H * W
    Co = out_ref.shape[1]
    shift = _make_shift_fn(shift_mode, HW)

    # ---- hoisted 3x3 boundary masks (computed once, shared by both convs) --
    pos = lax.broadcasted_iota(jnp.int32, (Co, HW), 1)
    col = (pos & (W - 1)) if (W & (W - 1)) == 0 else (pos % W)
    edge = {
        (-1, 0): pos >= W,              # row - 1 >= 0
        (1, 0): pos < (H - 1) * W,      # row + 1 <= H - 1
        (0, -1): col >= 1,              # col - 1 >= 0
        (0, 1): col < W - 1,            # col + 1 <= W - 1
    }
    tap_mask = {}
    for ky in (-1, 0, 1):
        for kx in (-1, 0, 1):
            m = None
            if ky != 0:
                m = edge[(ky, 0)]
            if kx != 0:
                mk = edge[(0, kx)]
                m = mk if m is None else jnp.logical_and(m, mk)
            tap_mask[(ky, kx)] = m

    def leaky(v):
        return jnp.where(v > 0, v, NEG_SLOPE * v)

    def conv3x3(t, w_ref, b_ref):
        # im2col: stack 9 lane-shifted copies of t along the channel
        # (sublane) axis -> (9*Co, HW), then one MXU matmul with K = 9*Co.
        t = t.astype(tap_dtype)
        taps = []
        for ky in (-1, 0, 1):
            for kx in (-1, 0, 1):
                d = ky * W + kx
                s = t if d == 0 else shift(t, d)
                m = tap_mask[(ky, kx)]
                if m is not None:
                    # jnp.where with zeros_like keeps the tap dtype (no f32
                    # promotion when taps are built in bf16).
                    s = jnp.where(m, s, jnp.zeros_like(s))
                taps.append(s)
        im2col = jnp.concatenate(taps, axis=0).astype(jnp.bfloat16)
        return jnp.dot(w_ref[...], im2col,
                       preferred_element_type=jnp.float32) + b_ref[...]

    # ---- fused nearest-neighbour upsample + channel concat -----------------
    xs = x_ref[0]                                     # (Cin_p, Hin*Win) bf16
    ups = jnp.dot(xs, rep_ref[...],
                  preferred_element_type=jnp.float32)  # (Cin_p, HW), exact
    # [up(x); prev] built once (f32 concat keeps 8-row operands tile-aligned),
    # reused by both branches.
    cat_f32 = jnp.concatenate([ups, prev_ref[0].astype(jnp.float32)], axis=0)
    cat_b16 = cat_f32.astype(jnp.bfloat16)            # (Cin_p + Cs_p, HW)

    # ---- branch 1: x1 = LeakyReLU(conv12(conv11(cat(up(x), prev)))) --------
    t1 = (jnp.dot(w11_ref[...], cat_b16, preferred_element_type=jnp.float32)
          + b11_ref[...])
    x1 = leaky(conv3x3(t1, w12_ref, b12_ref))

    # ---- branch 2: out = LeakyReLU(conv22(conv21(cat(up(x), prev, x1)))) ---
    cat2_b16 = jnp.concatenate([cat_b16, x1.astype(jnp.bfloat16)], axis=0)
    t2 = (jnp.dot(w21_ref[...], cat2_b16, preferred_element_type=jnp.float32)
          + b21_ref[...])
    out = leaky(conv3x3(t2, w22_ref, b22_ref))

    out_ref[0] = out.astype(out_ref.dtype)


# ---------------------------------------------------------------------------
# Wrapper / layout plumbing
# ---------------------------------------------------------------------------
def _const_spec(arr):
    nd = arr.ndim
    return pl.BlockSpec(arr.shape, lambda n, _nd=nd: (0,) * _nd)


def _round_up(v, m):
    return ((v + m - 1) // m) * m


def up_block_pallas(x_flat, prev_flat, rep, params, H, W, out_dtype):
    """x_flat: (N, Cin_p, Hin*Win) bf16; prev_flat: (N, Cs_p, H*W) bf16;
    rep: (Hin*Win, H*W) bf16 replication matrix.  Returns (N, Co, H*W)."""
    N, Cin_p, HWin = x_flat.shape
    _, Cs_p, HW = prev_flat.shape
    (w11, b11, w12, b12, w21, b21, w22, b22) = params
    Co = w11.shape[0]

    # bf16 taps only when Co packs whole bf16 sublane groups (v6e/v7x native
    # bf16 VALU); on v5e or small Co keep elementwise math in f32.
    tap_dtype = jnp.bfloat16 if Co % 16 == 0 else jnp.float32
    kernel = functools.partial(up_block_kernel, H=H, W=W,
                               shift_mode=_roll_mode(), tap_dtype=tap_dtype)

    in_specs = [
        pl.BlockSpec((1, Cin_p, HWin), lambda n: (n, 0, 0)),
        pl.BlockSpec((1, Cs_p, HW), lambda n: (n, 0, 0)),
        _const_spec(rep),
    ] + [_const_spec(p) for p in params]

    return pl.pallas_call(
        kernel,
        out_shape=jax.ShapeDtypeStruct((N, Co, HW), out_dtype),
        grid_spec=pltpu.PrefetchScalarGridSpec(
            num_scalar_prefetch=0,
            grid=(N,),
            in_specs=in_specs,
            out_specs=pl.BlockSpec((1, Co, HW), lambda n: (n, 0, 0)),
        ),
        compiler_params=pltpu.CompilerParams(
            dimension_semantics=("parallel",),
            # Toy sizes fit trivially; re-budget against v7x's 64 MiB/TC when
            # H-tiling at real feature-map sizes.
            vmem_limit_bytes=32 * 1024 * 1024),
    )(x_flat, prev_flat, rep, *params)


def prepare_params(torch_params, cin, cs, cin_p, cs_p):
    """Convert PyTorch Conv2d parameters (OIHW weights, (Co,) biases) into the
    kernel layout:
      * merged 1x1 convs as (Co, cin_p+cs_p[+Co]) bf16 with zero columns
        inserted where the activation channels are zero-padded,
      * 3x3 convs as (Co, 9*Co) im2col matrices (tap-major, channel-minor),
      * biases as (Co, 1) f32."""
    (w11, b11, w12, b12, w21, b21, w22, b22) = torch_params
    Co = w11.shape[0]
    assert Co % 8 == 0, "output_channels must be a multiple of 8"
    # TODO(synk): zero-pad the output-channel dim for Co not a multiple of 8.

    def to_bf16(a):
        return jnp.asarray(a, jnp.bfloat16)

    def bias_col(b):
        return jnp.asarray(b, jnp.float32).reshape(Co, 1)

    def im2col_w(w):  # (Co, Co, 3, 3) OIHW -> (Co, 9*Co), tap-major
        w = jnp.asarray(w, jnp.float32)
        return to_bf16(jnp.transpose(w, (0, 2, 3, 1)).reshape(Co, 9 * Co))

    def pad_cols(w2d, n_extra):
        # columns ordered [x (cin) | prev (cs) | extra]; insert zero columns so
        # they line up with the zero-padded activation channels.
        w2d = jnp.asarray(w2d, jnp.float32)
        parts = [w2d[:, :cin]]
        if cin_p > cin:
            parts.append(jnp.zeros((Co, cin_p - cin), jnp.float32))
        parts.append(w2d[:, cin:cin + cs])
        if cs_p > cs:
            parts.append(jnp.zeros((Co, cs_p - cs), jnp.float32))
        if n_extra:
            parts.append(w2d[:, cin + cs:])
        return to_bf16(jnp.concatenate(parts, axis=1))

    return (
        pad_cols(w11[:, :, 0, 0], 0), bias_col(b11),
        im2col_w(w12), bias_col(b12),
        pad_cols(w21[:, :, 0, 0], Co), bias_col(b21),
        im2col_w(w22), bias_col(b22),
    )


def make_upsample_matrix(hin, win, stride):
    """(hin*win, H*W) 0/1 nearest-neighbour replication matrix R so that
    up(x)[c, :] == x[c, :] @ R  (exact, even in bf16)."""
    H, W = hin * stride, win * stride
    rep = np.zeros((hin * win, H * W), np.float32)
    for h in range(H):
        for w in range(W):
            rep[(h // stride) * win + (w // stride), h * W + w] = 1.0
    return jnp.asarray(rep, jnp.bfloat16)


def dense_up_block_forward(prev_feature_map, x, torch_params, up_stride,
                           out_dtype=jnp.bfloat16):
    """Same semantics as DenseNet2D_up_block_concat.forward (dropout=False).
    prev_feature_map: (N, Cs, H, W) f32; x: (N, Cin, Hin, Win) f32 (NCHW).
    Compute is bf16 on the MXU with f32 accumulation; output dtype is
    configurable (bf16 default to halve HBM writeback)."""
    N, Cs, H, W = prev_feature_map.shape
    _, Cin, Hin, Win = x.shape
    assert H == Hin * up_stride and W == Win * up_stride
    Co = torch_params[0].shape[0]

    cin_p = _round_up(Cin, 8)
    cs_p = _round_up(Cs, 8)
    params = prepare_params(torch_params, Cin, Cs, cin_p, cs_p)
    rep = make_upsample_matrix(Hin, Win, up_stride)

    # NCHW already has spatial last -> only reshapes + zero-channel pads
    # (so every in-kernel sublane concat is 8-row aligned), no transposes.
    def flat_pad(a, c_to):
        n, c, hh, ww = a.shape
        a = jnp.asarray(a, jnp.bfloat16).reshape(n, c, hh * ww)
        if c_to > c:
            a = jnp.concatenate(
                [a, jnp.zeros((n, c_to - c, hh * ww), jnp.bfloat16)], axis=1)
        return a

    x_flat = flat_pad(x, cin_p)
    prev_flat = flat_pad(prev_feature_map, cs_p)

    out_flat = up_block_pallas(x_flat, prev_flat, rep, params, H, W, out_dtype)
    return out_flat.reshape(N, Co, H, W)


# ---------------------------------------------------------------------------
# pure-JAX f32 reference (for checking)
# ---------------------------------------------------------------------------
def _conv_nchw(inp, w_oihw, b, pad):
    out = lax.conv_general_dilated(
        inp, w_oihw, window_strides=(1, 1), padding=[(pad, pad), (pad, pad)],
        dimension_numbers=('NCHW', 'OIHW', 'NCHW'),
        precision=lax.Precision.HIGHEST)
    return out + b.reshape(1, -1, 1, 1)


def ref_forward(prev_feature_map, x, torch_params, up_stride):
    (w11, b11, w12, b12, w21, b21, w22, b22) = torch_params
    xu = jnp.repeat(jnp.repeat(x, up_stride, axis=2), up_stride, axis=3)
    xcat = jnp.concatenate([xu, prev_feature_map], axis=1)
    t = _conv_nchw(_conv_nchw(xcat, w11, b11, 0), w12, b12, 1)
    x1 = jnp.where(t > 0, t, NEG_SLOPE * t)
    x21 = jnp.concatenate([xcat, x1], axis=1)
    t2 = _conv_nchw(_conv_nchw(x21, w21, b21, 0), w22, b22, 1)
    return jnp.where(t2 > 0, t2, NEG_SLOPE * t2)


if __name__ == "__main__":
    # Module config: skip_channels=4, input_channels=4, output_channels=8,
    # up_stride=2 (dropout=False).
    skip_c, in_c, out_c, up_stride = 4, 4, 8, 2
    N, Hin, Win = 2, 8, 8
    H, W = Hin * up_stride, Win * up_stride
    C1 = skip_c + in_c

    key = jax.random.PRNGKey(0)
    ks = jax.random.split(key, 10)
    x = jax.random.normal(ks[0], (N, in_c, Hin, Win), jnp.float32)
    prev = jax.random.normal(ks[1], (N, skip_c, H, W), jnp.float32)

    # synthetic parameters in PyTorch Conv2d layout (OIHW weights, (Co,) bias)
    w11 = 0.1 * jax.random.normal(ks[2], (out_c, C1, 1, 1), jnp.float32)
    b11 = 0.1 * jax.random.normal(ks[3], (out_c,), jnp.float32)
    w12 = 0.1 * jax.random.normal(ks[4], (out_c, out_c, 3, 3), jnp.float32)
    b12 = 0.1 * jax.random.normal(ks[5], (out_c,), jnp.float32)
    w21 = 0.1 * jax.random.normal(ks[6], (out_c, C1 + out_c, 1, 1), jnp.float32)
    b21 = 0.1 * jax.random.normal(ks[7], (out_c,), jnp.float32)
    w22 = 0.1 * jax.random.normal(ks[8], (out_c, out_c, 3, 3), jnp.float32)
    b22 = 0.1 * jax.random.normal(ks[9], (out_c,), jnp.float32)
    torch_params = (w11, b11, w12, b12, w21, b21, w22, b22)

    out = dense_up_block_forward(prev, x, torch_params, up_stride)
    out = jax.block_until_ready(out)
    assert out.shape == (N, out_c, H, W)

    ref = jax.block_until_ready(ref_forward(prev, x, torch_params, up_stride))
    np.testing.assert_allclose(
        np.asarray(jax.device_get(out)).astype(np.float32),
        np.asarray(jax.device_get(ref)),
        rtol=3e-2, atol=3e-2)
    print("KERNEL_OK")
</pallas_src>

<mosaic_0001>
module attributes {stable_mosaic.version = 11 : i64} {
  func.func @_kernel(%arg0: memref<8x128xf32, #tpu.memory_space<vmem>>, %arg1: memref<8x128xf32, #tpu.memory_space<vmem>>) attributes {dimension_semantics = [], scalar_prefetch = 0 : i64, scratch_operands = 0 : i64, tpu.core_type = #tpu.core_type<tc>} {
    %c0 = arith.constant 0 : index
    %c0_0 = arith.constant 0 : index
    %0 = vector.load %arg0[%c0, %c0_0] : memref<8x128xf32, #tpu.memory_space<vmem>>, vector<8x128xf32>
    %c1_i32 = arith.constant 1 : i32
    %1 = tpu.dynamic_rotate %0 by %c1_i32 dim 1 : vector<8x128xf32>, i32 -> vector<8x128xf32>
    %c0_1 = arith.constant 0 : index
    %c0_2 = arith.constant 0 : index
    %2 = vector.load %arg1[%c0_1, %c0_2] : memref<8x128xf32, #tpu.memory_space<vmem>>, vector<8x128xf32>
    tpu.vector_store %arg1[%c0_1, %c0_2], %1 {strides = array<i32>} : memref<8x128xf32, #tpu.memory_space<vmem>>, vector<8x128xf32>,
    return
  }
}

module attributes {stable_mosaic.version = 11 : i64} {
  func.func @up_block_kernel(%arg0: i32, %arg1: memref<1x8x64xbf16, #tpu.memory_space<vmem>>, %arg2: memref<1x8x256xbf16, #tpu.memory_space<vmem>>, %arg3: memref<64x256xbf16, #tpu.memory_space<vmem>>, %arg4: memref<8x16xbf16, #tpu.memory_space<vmem>>, %arg5: memref<8x1xf32, #tpu.memory_space<vmem>>, %arg6: memref<8x72xbf16, #tpu.memory_space<vmem>>, %arg7: memref<8x1xf32, #tpu.memory_space<vmem>>, %arg8: memref<8x24xbf16, #tpu.memory_space<vmem>>, %arg9: memref<8x1xf32, #tpu.memory_space<vmem>>, %arg10: memref<8x72xbf16, #tpu.memory_space<vmem>>, %arg11: memref<8x1xf32, #tpu.memory_space<vmem>>, %arg12: memref<1x8x256xbf16, #tpu.memory_space<vmem>>) attributes {dimension_semantics = [#tpu.dimension_semantics<parallel>], iteration_bounds = array<i64: 2>, scalar_prefetch = 0 : i64, scratch_operands = 0 : i64, tpu.core_type = #tpu.core_type<tc>, window_params = [{transform_indices = @transform_0, window_bounds = array<i64: 1, 8, 64>}, {transform_indices = @transform_1, window_bounds = array<i64: 1, 8, 256>}, {pipeline_mode = #tpu.pipeline_mode<synchronous>, transform_indices = @transform_2, window_bounds = array<i64: 64, 256>}, {pipeline_mode = #tpu.pipeline_mode<synchronous>, transform_indices = @transform_3, window_bounds = array<i64: 8, 16>}, {pipeline_mode = #tpu.pipeline_mode<synchronous>, transform_indices = @transform_4, window_bounds = array<i64: 8, 1>}, {pipeline_mode = #tpu.pipeline_mode<synchronous>, transform_indices = @transform_5, window_bounds = array<i64: 8, 72>}, {pipeline_mode = #tpu.pipeline_mode<synchronous>, transform_indices = @transform_6, window_bounds = array<i64: 8, 1>}, {pipeline_mode = #tpu.pipeline_mode<synchronous>, transform_indices = @transform_7, window_bounds = array<i64: 8, 24>}, {pipeline_mode = #tpu.pipeline_mode<synchronous>, transform_indices = @transform_8, window_bounds = array<i64: 8, 1>}, {pipeline_mode = #tpu.pipeline_mode<synchronous>, transform_indices = @transform_9, window_bounds = array<i64: 8, 72>}, {pipeline_mode = #tpu.pipeline_mode<synchronous>, transform_indices = @transform_10, window_bounds = array<i64: 8, 1>}, {transform_indices = @transform_11, window_bounds = array<i64: 1, 8, 256>}]} {
    %0 = tpu.iota {dimensions = array<i32: 1>} : vector<8x256xi32>
    %c15_i32 = arith.constant 15 : i32
    %1 = vector.broadcast %c15_i32 : i32 to vector<8x256xi32>
    %2 = arith.andi %0, %1 : vector<8x256xi32>
    %c16_i32 = arith.constant 16 : i32
    %3 = vector.broadcast %c16_i32 : i32 to vector<8x256xi32>
    %4 = arith.cmpi sge, %0, %3 : vector<8x256xi32>
    %c240_i32 = arith.constant 240 : i32
    %5 = vector.broadcast %c240_i32 : i32 to vector<8x256xi32>
    %6 = arith.cmpi slt, %0, %5 : vector<8x256xi32>
    %c1_i32 = arith.constant 1 : i32
    %7 = vector.broadcast %c1_i32 : i32 to vector<8x256xi32>
    %8 = arith.cmpi sge, %2, %7 : vector<8x256xi32>
    %c15_i32_0 = arith.constant 15 : i32
    %9 = vector.broadcast %c15_i32_0 : i32 to vector<8x256xi32>
    %10 = arith.cmpi slt, %2, %9 : vector<8x256xi32>
    %11 = arith.andi %4, %8 : vector<8x256xi1>
    %12 = arith.andi %4, %10 : vector<8x256xi1>
    %13 = arith.andi %6, %8 : vector<8x256xi1>
    %14 = arith.andi %6, %10 : vector<8x256xi1>
    %c0 = arith.constant 0 : index
    %c0_1 = arith.constant 0 : index
    %c0_2 = arith.constant 0 : index
    %15 = vector.load %arg1[%c0, %c0_1, %c0_2] : memref<1x8x64xbf16, #tpu.memory_space<vmem>>, vector<1x8x64xbf16>
    %16 = vector.shape_cast %15 : vector<1x8x64xbf16> to vector<8x64xbf16>
    %c0_3 = arith.constant 0 : index
    %c0_4 = arith.constant 0 : index
    %17 = vector.load %arg3[%c0_3, %c0_4] : memref<64x256xbf16, #tpu.memory_space<vmem>>, vector<64x256xbf16>
    %cst = arith.constant dense<0.000000e+00> : vector<8x256xf32>
    %18 = tpu.matmul %16, %17, %cst {dimension_numbers = #tpu.dot_dimension_numbers<[1], [0], [0], [1], [0, 0, 1, 1], [], []>} : vector<8x64xbf16>, vector<64x256xbf16>, vector<8x256xf32> -> vector<8x256xf32>
    %c0_5 = arith.constant 0 : index
    %c0_6 = arith.constant 0 : index
    %c0_7 = arith.constant 0 : index
    %19 = vector.load %arg2[%c0_5, %c0_6, %c0_7] : memref<1x8x256xbf16, #tpu.memory_space<vmem>>, vector<1x8x256xbf16>
    %20 = vector.shape_cast %19 : vector<1x8x256xbf16> to vector<8x256xbf16>
    %21 = arith.extf %20 : vector<8x256xbf16> to vector<8x256xf32>
    %22 = tpu.concatenate %18, %21 in 0 : vector<8x256xf32>, vector<8x256xf32> -> vector<16x256xf32>
    %23 = arith.truncf %22 : vector<16x256xf32> to vector<16x256xbf16>
    %c0_8 = arith.constant 0 : index
    %c0_9 = arith.constant 0 : index
    %24 = vector.load %arg4[%c0_8, %c0_9] : memref<8x16xbf16, #tpu.memory_space<vmem>>, vector<8x16xbf16>
    %cst_10 = arith.constant dense<0.000000e+00> : vector<8x256xf32>
    %25 = tpu.matmul %24, %23, %cst_10 {dimension_numbers = #tpu.dot_dimension_numbers<[1], [0], [0], [1], [0, 0, 1, 1], [], []>} : vector<8x16xbf16>, vector<16x256xbf16>, vector<8x256xf32> -> vector<8x256xf32>
    %c0_11 = arith.constant 0 : index
    %c0_12 = arith.constant 0 : index
    %26 = vector.load %arg5[%c0_11, %c0_12] : memref<8x1xf32, #tpu.memory_space<vmem>>, vector<8x1xf32>
    %27 = vector.broadcast %26 : vector<8x1xf32> to vector<8x256xf32>
    %28 = arith.addf %25, %27 : vector<8x256xf32>
    %cst_13 = arith.constant 0.000000e+00 : f32
    %29 = vector.broadcast %cst_13 : f32 to vector<8x17xf32>
    %30 = vector.extract_strided_slice %28 {offsets = [0, 0], sizes = [8, 239], strides = [1, 1]} : vector<8x256xf32> to vector<8x239xf32>
    %31 = tpu.concatenate %29, %30 in 1 : vector<8x17xf32>, vector<8x239xf32> -> vector<8x256xf32>
    %cst_14 = arith.constant 0.000000e+00 : f32
    %32 = vector.broadcast %cst_14 : f32 to vector<8x256xf32>
    %33 = arith.select %11, %31, %32 : vector<8x256xi1>, vector<8x256xf32>
    %cst_15 = arith.constant 0.000000e+00 : f32
    %34 = vector.broadcast %cst_15 : f32 to vector<8x16xf32>
    %35 = vector.extract_strided_slice %28 {offsets = [0, 0], sizes = [8, 240], strides = [1, 1]} : vector<8x256xf32> to vector<8x240xf32>
    %36 = tpu.concatenate %34, %35 in 1 : vector<8x16xf32>, vector<8x240xf32> -> vector<8x256xf32>
    %cst_16 = arith.constant 0.000000e+00 : f32
    %37 = vector.broadcast %cst_16 : f32 to vector<8x256xf32>
    %38 = arith.select %4, %36, %37 : vector<8x256xi1>, vector<8x256xf32>
    %cst_17 = arith.constant 0.000000e+00 : f32
    %39 = vector.broadcast %cst_17 : f32 to vector<8x15xf32>
    %40 = vector.extract_strided_slice %28 {offsets = [0, 0], sizes = [8, 241], strides = [1, 1]} : vector<8x256xf32> to vector<8x241xf32>
    %41 = tpu.concatenate %39, %40 in 1 : vector<8x15xf32>, vector<8x241xf32> -> vector<8x256xf32>
    %cst_18 = arith.constant 0.000000e+00 : f32
    %42 = vector.broadcast %cst_18 : f32 to vector<8x256xf32>
    %43 = arith.select %12, %41, %42 : vector<8x256xi1>, vector<8x256xf32>
    %cst_19 = arith.constant 0.000000e+00 : f32
    %44 = vector.broadcast %cst_19 : f32 to vector<8x1xf32>
    %45 = vector.extract_strided_slice %28 {offsets = [0, 0], sizes = [8, 255], strides = [1, 1]} : vector<8x256xf32> to vector<8x255xf32>
    %46 = tpu.concatenate %44, %45 in 1 : vector<8x1xf32>, vector<8x255xf32> -> vector<8x256xf32>
    %cst_20 = arith.constant 0.000000e+00 : f32
    %47 = vector.broadcast %cst_20 : f32 to vector<8x256xf32>
    %48 = arith.select %8, %46, %47 : vector<8x256xi1>, vector<8x256xf32>
    %49 = vector.extract_strided_slice %28 {offsets = [0, 1], sizes = [8, 255], strides = [1, 1]} : vector<8x256xf32> to vector<8x255xf32>
    %cst_21 = arith.constant 0.000000e+00 : f32
    %50 = vector.broadcast %cst_21 : f32 to vector<8x1xf32>
    %51 = tpu.concatenate %49, %50 in 1 : vector<8x255xf32>, vector<8x1xf32> -> vector<8x256xf32>
    %cst_22 = arith.constant 0.000000e+00 : f32
    %52 = vector.broadcast %cst_22 : f32 to vector<8x256xf32>
    %53 = arith.select %10, %51, %52 : vector<8x256xi1>, vector<8x256xf32>
    %54 = vector.extract_strided_slice %28 {offsets = [0, 15], sizes = [8, 241], strides = [1, 1]} : vector<8x256xf32> to vector<8x241xf32>
    %cst_23 = arith.constant 0.000000e+00 : f32
    %55 = vector.broadcast %cst_23 : f32 to vector<8x15xf32>
    %56 = tpu.concatenate %54, %55 in 1 : vector<8x241xf32>, vector<8x15xf32> -> vector<8x256xf32>
    %cst_24 = arith.constant 0.000000e+00 : f32
    %57 = vector.broadcast %cst_24 : f32 to vector<8x256xf32>
    %58 = arith.select %13, %56, %57 : vector<8x256xi1>, vector<8x256xf32>
    %59 = vector.extract_strided_slice %28 {offsets = [0, 16], sizes = [8, 240], strides = [1, 1]} : vector<8x256xf32> to vector<8x240xf32>
    %cst_25 = arith.constant 0.000000e+00 : f32
    %60 = vector.broadcast %cst_25 : f32 to vector<8x16xf32>
    %61 = tpu.concatenate %59, %60 in 1 : vector<8x240xf32>, vector<8x16xf32> -> vector<8x256xf32>
    %cst_26 = arith.constant 0.000000e+00 : f32
    %62 = vector.broadcast %cst_26 : f32 to vector<8x256xf32>
    %63 = arith.select %6, %61, %62 : vector<8x256xi1>, vector<8x256xf32>
    %64 = vector.extract_strided_slice %28 {offsets = [0, 17], sizes = [8, 239], strides = [1, 1]} : vector<8x256xf32> to vector<8x239xf32>
    %cst_27 = arith.constant 0.000000e+00 : f32
    %65 = vector.broadcast %cst_27 : f32 to vector<8x17xf32>
    %66 = tpu.concatenate %64, %65 in 1 : vector<8x239xf32>, vector<8x17xf32> -> vector<8x256xf32>
    %cst_28 = arith.constant 0.000000e+00 : f32
    %67 = vector.broadcast %cst_28 : f32 to vector<8x256xf32>
    %68 = arith.select %14, %66, %67 : vector<8x256xi1>, vector<8x256xf32>
    %69 = tpu.concatenate %33, %38, %43, %48, %28, %53, %58, %63, %68 in 0 : vector<8x256xf32>, vector<8x256xf32>, vector<8x256xf32>, vector<8x256xf32>, vector<8x256xf32>, vector<8x256xf32>, vector<8x256xf32>, vector<8x256xf32>, vector<8x256xf32> -> vector<72x256xf32>
    %70 = arith.truncf %69 : vector<72x256xf32> to vector<72x256xbf16>
    %c0_29 = arith.constant 0 : index
    %c0_30 = arith.constant 0 : index
    %71 = vector.load %arg6[%c0_29, %c0_30] : memref<8x72xbf16, #tpu.memory_space<vmem>>, vector<8x72xbf16>
    %cst_31 = arith.constant dense<0.000000e+00> : vector<8x256xf32>
    %72 = tpu.matmul %71, %70, %cst_31 {dimension_numbers = #tpu.dot_dimension_numbers<[1], [0], [0], [1], [0, 0, 1, 1], [], []>} : vector<8x72xbf16>, vector<72x256xbf16>, vector<8x256xf32> -> vector<8x256xf32>
    %c0_32 = arith.constant 0 : index
    %c0_33 = arith.constant 0 : index
    %73 = vector.load %arg7[%c0_32, %c0_33] : memref<8x1xf32, #tpu.memory_space<vmem>>, vector<8x1xf32>
    %74 = vector.broadcast %73 : vector<8x1xf32> to vector<8x256xf32>
    %75 = arith.addf %72, %74 : vector<8x256xf32>
    %cst_34 = arith.constant 0.000000e+00 : f32
    %76 = vector.broadcast %cst_34 : f32 to vector<8x256xf32>
    %77 = arith.cmpf ogt, %75, %76 : vector<8x256xf32>
    %cst_35 = arith.constant 0.00999999977 : f32
    %78 = vector.broadcast %cst_35 : f32 to vector<8x256xf32>
    %79 = arith.mulf %78, %75 : vector<8x256xf32>
    %80 = arith.select %77, %75, %79 : vector<8x256xi1>, vector<8x256xf32>
    %81 = arith.truncf %80 : vector<8x256xf32> to vector<8x256xbf16>
    %82 = tpu.concatenate %23, %81 in 0 : vector<16x256xbf16>, vector<8x256xbf16> -> vector<24x256xbf16>
    %c0_36 = arith.constant 0 : index
    %c0_37 = arith.constant 0 : index
    %83 = vector.load %arg8[%c0_36, %c0_37] : memref<8x24xbf16, #tpu.memory_space<vmem>>, vector<8x24xbf16>
    %cst_38 = arith.constant dense<0.000000e+00> : vector<8x256xf32>
    %84 = tpu.matmul %83, %82, %cst_38 {dimension_numbers = #tpu.dot_dimension_numbers<[1], [0], [0], [1], [0, 0, 1, 1], [], []>} : vector<8x24xbf16>, vector<24x256xbf16>, vector<8x256xf32> -> vector<8x256xf32>
    %c0_39 = arith.constant 0 : index
    %c0_40 = arith.constant 0 : index
    %85 = vector.load %arg9[%c0_39, %c0_40] : memref<8x1xf32, #tpu.memory_space<vmem>>, vector<8x1xf32>
    %86 = vector.broadcast %85 : vector<8x1xf32> to vector<8x256xf32>
    %87 = arith.addf %84, %86 : vector<8x256xf32>
    %cst_41 = arith.constant 0.000000e+00 : f32
    %88 = vector.broadcast %cst_41 : f32 to vector<8x17xf32>
    %89 = vector.extract_strided_slice %87 {offsets = [0, 0], sizes = [8, 239], strides = [1, 1]} : vector<8x256xf32> to vector<8x239xf32>
    %90 = tpu.concatenate %88, %89 in 1 : vector<8x17xf32>, vector<8x239xf32> -> vector<8x256xf32>
    %cst_42 = arith.constant 0.000000e+00 : f32
    %91 = vector.broadcast %cst_42 : f32 to vector<8x256xf32>
    %92 = arith.select %11, %90, %91 : vector<8x256xi1>, vector<8x256xf32>
    %cst_43 = arith.constant 0.000000e+00 : f32
    %93 = vector.broadcast %cst_43 : f32 to vector<8x16xf32>
    %94 = vector.extract_strided_slice %87 {offsets = [0, 0], sizes = [8, 240], strides = [1, 1]} : vector<8x256xf32> to vector<8x240xf32>
    %95 = tpu.concatenate %93, %94 in 1 : vector<8x16xf32>, vector<8x240xf32> -> vector<8x256xf32>
    %cst_44 = arith.constant 0.000000e+00 : f32
    %96 = vector.broadcast %cst_44 : f32 to vector<8x256xf32>
    %97 = arith.select %4, %95, %96 : vector<8x256xi1>, vector<8x256xf32>
    %cst_45 = arith.constant 0.000000e+00 : f32
    %98 = vector.broadcast %cst_45 : f32 to vector<8x15xf32>
    %99 = vector.extract_strided_slice %87 {offsets = [0, 0], sizes = [8, 241], strides = [1, 1]} : vector<8x256xf32> to vector<8x241xf32>
    %100 = tpu.concatenate %98, %99 in 1 : vector<8x15xf32>, vector<8x241xf32> -> vector<8x256xf32>
    %cst_46 = arith.constant 0.000000e+00 : f32
    %101 = vector.broadcast %cst_46 : f32 to vector<8x256xf32>
    %102 = arith.select %12, %100, %101 : vector<8x256xi1>, vector<8x256xf32>
    %cst_47 = arith.constant 0.000000e+00 : f32
    %103 = vector.broadcast %cst_47 : f32 to vector<8x1xf32>
    %104 = vector.extract_strided_slice %87 {offsets = [0, 0], sizes = [8, 255], strides = [1, 1]} : vector<8x256xf32> to vector<8x255xf32>
    %105 = tpu.concatenate %103, %104 in 1 : vector<8x1xf32>, vector<8x255xf32> -> vector<8x256xf32>
    %cst_48 = arith.constant 0.000000e+00 : f32
    %106 = vector.broadcast %cst_48 : f32 to vector<8x256xf32>
    %107 = arith.select %8, %105, %106 : vector<8x256xi1>, vector<8x256xf32>
    %108 = vector.extract_strided_slice %87 {offsets = [0, 1], sizes = [8, 255], strides = [1, 1]} : vector<8x256xf32> to vector<8x255xf32>
    %cst_49 = arith.constant 0.000000e+00 : f32
    %109 = vector.broadcast %cst_49 : f32 to vector<8x1xf32>
    %110 = tpu.concatenate %108, %109 in 1 : vector<8x255xf32>, vector<8x1xf32> -> vector<8x256xf32>
    %cst_50 = arith.constant 0.000000e+00 : f32
    %111 = vector.broadcast %cst_50 : f32 to vector<8x256xf32>
    %112 = arith.select %10, %110, %111 : vector<8x256xi1>, vector<8x256xf32>
    %113 = vector.extract_strided_slice %87 {offsets = [0, 15], sizes = [8, 241], strides = [1, 1]} : vector<8x256xf32> to vector<8x241xf32>
    %cst_51 = arith.constant 0.000000e+00 : f32
    %114 = vector.broadcast %cst_51 : f32 to vector<8x15xf32>
    %115 = tpu.concatenate %113, %114 in 1 : vector<8x241xf32>, vector<8x15xf32> -> vector<8x256xf32>
    %cst_52 = arith.constant 0.000000e+00 : f32
    %116 = vector.broadcast %cst_52 : f32 to vector<8x256xf32>
    %117 = arith.select %13, %115, %116 : vector<8x256xi1>, vector<8x256xf32>
    %118 = vector.extract_strided_slice %87 {offsets = [0, 16], sizes = [8, 240], strides = [1, 1]} : vector<8x256xf32> to vector<8x240xf32>
    %cst_53 = arith.constant 0.000000e+00 : f32
    %119 = vector.broadcast %cst_53 : f32 to vector<8x16xf32>
    %120 = tpu.concatenate %118, %119 in 1 : vector<8x240xf32>, vector<8x16xf32> -> vector<8x256xf32>
    %cst_54 = arith.constant 0.000000e+00 : f32
    %121 = vector.broadcast %cst_54 : f32 to vector<8x256xf32>
    %122 = arith.select %6, %120, %121 : vector<8x256xi1>, vector<8x256xf32>
    %123 = vector.extract_strided_slice %87 {offsets = [0, 17], sizes = [8, 239], strides = [1, 1]} : vector<8x256xf32> to vector<8x239xf32>
    %cst_55 = arith.constant 0.000000e+00 : f32
    %124 = vector.broadcast %cst_55 : f32 to vector<8x17xf32>
    %125 = tpu.concatenate %123, %124 in 1 : vector<8x239xf32>, vector<8x17xf32> -> vector<8x256xf32>
    %cst_56 = arith.constant 0.000000e+00 : f32
    %126 = vector.broadcast %cst_56 : f32 to vector<8x256xf32>
    %127 = arith.select %14, %125, %126 : vector<8x256xi1>, vector<8x256xf32>
    %128 = tpu.concatenate %92, %97, %102, %107, %87, %112, %117, %122, %127 in 0 : vector<8x256xf32>, vector<8x256xf32>, vector<8x256xf32>, vector<8x256xf32>, vector<8x256xf32>, vector<8x256xf32>, vector<8x256xf32>, vector<8x256xf32>, vector<8x256xf32> -> vector<72x256xf32>
    %129 = arith.truncf %128 : vector<72x256xf32> to vector<72x256xbf16>
    %c0_57 = arith.constant 0 : index
    %c0_58 = arith.constant 0 : index
    %130 = vector.load %arg10[%c0_57, %c0_58] : memref<8x72xbf16, #tpu.memory_space<vmem>>, vector<8x72xbf16>
    %cst_59 = arith.constant dense<0.000000e+00> : vector<8x256xf32>
    %131 = tpu.matmul %130, %129, %cst_59 {dimension_numbers = #tpu.dot_dimension_numbers<[1], [0], [0], [1], [0, 0, 1, 1], [], []>} : vector<8x72xbf16>, vector<72x256xbf16>, vector<8x256xf32> -> vector<8x256xf32>
    %c0_60 = arith.constant 0 : index
    %c0_61 = arith.constant 0 : index
    %132 = vector.load %arg11[%c0_60, %c0_61] : memref<8x1xf32, #tpu.memory_space<vmem>>, vector<8x1xf32>
    %133 = vector.broadcast %132 : vector<8x1xf32> to vector<8x256xf32>
    %134 = arith.addf %131, %133 : vector<8x256xf32>
    %cst_62 = arith.constant 0.000000e+00 : f32
    %135 = vector.broadcast %cst_62 : f32 to vector<8x256xf32>
    %136 = arith.cmpf ogt, %134, %135 : vector<8x256xf32>
    %cst_63 = arith.constant 0.00999999977 : f32
    %137 = vector.broadcast %cst_63 : f32 to vector<8x256xf32>
    %138 = arith.mulf %137, %134 : vector<8x256xf32>
    %139 = arith.select %136, %134, %138 : vector<8x256xi1>, vector<8x256xf32>
    %140 = arith.truncf %139 : vector<8x256xf32> to vector<8x256xbf16>
    %c0_64 = arith.constant 0 : index
    %c0_65 = arith.constant 0 : index
    %c0_66 = arith.constant 0 : index
    %141 = vector.load %arg12[%c0_64, %c0_65, %c0_66] : memref<1x8x256xbf16, #tpu.memory_space<vmem>>, vector<1x8x256xbf16>
    %142 = vector.shape_cast %141 : vector<1x8x256xbf16> to vector<8x256xbf16>
    %143 = vector.shape_cast %140 : vector<8x256xbf16> to vector<1x8x256xbf16>
    tpu.vector_store %arg12[%c0_64, %c0_65, %c0_66], %143 {strides = array<i32>} : memref<1x8x256xbf16, #tpu.memory_space<vmem>>, vector<1x8x256xbf16>,
    return
  }
  func.func @transform_0(%arg0: i32) -> (i32, i32, i32) {
    %c0_i32 = arith.constant 0 : i32
    %c0_i32_0 = arith.constant 0 : i32
    %c0_i32_1 = arith.constant 0 : i32
    return %arg0, %c0_i32, %c0_i32_0 : i32, i32, i32
  }
  func.func @transform_1(%arg0: i32) -> (i32, i32, i32) {
    %c0_i32 = arith.constant 0 : i32
    %c0_i32_0 = arith.constant 0 : i32
    %c0_i32_1 = arith.constant 0 : i32
    return %arg0, %c0_i32, %c0_i32_0 : i32, i32, i32
  }
  func.func @transform_2(%arg0: i32) -> (i32, i32) {
    %c0_i32 = arith.constant 0 : i32
    %c0_i32_0 = arith.constant 0 : i32
    %c0_i32_1 = arith.constant 0 : i32
    return %c0_i32, %c0_i32_0 : i32, i32
  }
  func.func @transform_3(%arg0: i32) -> (i32, i32) {
    %c0_i32 = arith.constant 0 : i32
    %c0_i32_0 = arith.constant 0 : i32
    %c0_i32_1 = arith.constant 0 : i32
    return %c0_i32, %c0_i32_0 : i32, i32
  }
  func.func @transform_4(%arg0: i32) -> (i32, i32) {
    %c0_i32 = arith.constant 0 : i32
    %c0_i32_0 = arith.constant 0 : i32
    %c0_i32_1 = arith.constant 0 : i32
    return %c0_i32, %c0_i32_0 : i32, i32
  }
  func.func @transform_5(%arg0: i32) -> (i32, i32) {
    %c0_i32 = arith.constant 0 : i32
    %c0_i32_0 = arith.constant 0 : i32
    %c0_i32_1 = arith.constant 0 : i32
    return %c0_i32, %c0_i32_0 : i32, i32
  }
  func.func @transform_6(%arg0: i32) -> (i32, i32) {
    %c0_i32 = arith.constant 0 : i32
    %c0_i32_0 = arith.constant 0 : i32
    %c0_i32_1 = arith.constant 0 : i32
    return %c0_i32, %c0_i32_0 : i32, i32
  }
  func.func @transform_7(%arg0: i32) -> (i32, i32) {
    %c0_i32 = arith.constant 0 : i32
    %c0_i32_0 = arith.constant 0 : i32
    %c0_i32_1 = arith.constant 0 : i32
    return %c0_i32, %c0_i32_0 : i32, i32
  }
  func.func @transform_8(%arg0: i32) -> (i32, i32) {
    %c0_i32 = arith.constant 0 : i32
    %c0_i32_0 = arith.constant 0 : i32
    %c0_i32_1 = arith.constant 0 : i32
    return %c0_i32, %c0_i32_0 : i32, i32
  }
  func.func @transform_9(%arg0: i32) -> (i32, i32) {
    %c0_i32 = arith.constant 0 : i32
    %c0_i32_0 = arith.constant 0 : i32
    %c0_i32_1 = arith.constant 0 : i32
    return %c0_i32, %c0_i32_0 : i32, i32
  }
  func.func @transform_10(%arg0: i32) -> (i32, i32) {
    %c0_i32 = arith.constant 0 : i32
    %c0_i32_0 = arith.constant 0 : i32
    %c0_i32_1 = arith.constant 0 : i32
    return %c0_i32, %c0_i32_0 : i32, i32
  }
  func.func @transform_11(%arg0: i32) -> (i32, i32, i32) {
    %c0_i32 = arith.constant 0 : i32
    %c0_i32_0 = arith.constant 0 : i32
    %c0_i32_1 = arith.constant 0 : i32
    return %arg0, %c0_i32, %c0_i32_0 : i32, i32, i32
  }
}

</mosaic_0001>

<llo_original>
// kernel: tpu_custom_call.1
$region0: #{tpu_custom_call.1}
  #allocation0 [shape = 'u32[]', space=smem, size = 0x4, offset = 0x4, fixed_abs, tag = 'smem constant byte address 0x4 - core index']
  #allocation1 [shape = 'u32[144,128]{1,0:T(1,128)}', space=vmem, size = 0x12000, scoped, tag = 'internal scratch']
  %s0 = inlined_call_operand.hbm [shape: f32[8,128], index: 0, kind: input, shape index: {}]
  %s1 = inlined_call_operand.hbm [shape: f32[8,128], index: 1, kind: output, shape index: {}]
  %s2 = sld [smem:[#allocation0]]
  $region18: #{tpu_custom_call.1} parent=0
    _
  %s4 = ssub.s32 1, %s2
  %s5 = scalar_select 0, %s4, %s2
  $region1: #{tpu_custom_call.1} parent=0
    #allocation2 [shape = 'u8[4096]{0}', space=vmem, size = 0x1000, scoped, tag = 'input window, operand 0, single buffered']
    #allocation3 [shape = 's32[1]{0}', space=sflag, size = 0x4, scoped, tag = 'scoped memory for tpu_custom_call.1']
    #allocation4 [shape = 's32[1]{0}', space=sflag, size = 0x4, scoped, tag = 'scoped memory for tpu_custom_call.1']
    #allocation5 [shape = 'u8[4096]{0}', space=vmem, size = 0x1000, scoped, tag = 'output window, operand 0, single buffered']
    %6 = vsyncpa [#allocation3], 0
    %7 = vsyncpa [#allocation4], 0
    // Predicated region
    $region2: #{tpu_custom_call.1} parent=1 // pred_check
      _
    $region3: #{tpu_custom_call.1} parent=1 // pred_check_branch
      %9 = sbr.rel (0) target = $region5
    $region4: #{tpu_custom_call.1} parent=1 // pred_region
      %s11 = ssub.s32 128, 128
      %12 = vsyncadd [#allocation3], %s11
      %s14 = sshll.u32 [#allocation2], 4
      %s15 = int_to_ptr.vmem [resolvable:$true] %s14
      %17 = dma.hbm_to_vmem [thread:$0]  %s0, 128, %s15, [#allocation3]
    $region5: #{tpu_custom_call.1} parent=1 // pred_fallthru
      _
    // Predicated region
    $region6: #{tpu_custom_call.1} parent=1 // pred_check
      _
    $region7: #{tpu_custom_call.1} parent=1 // pred_check_branch
      %19 = sbr.rel (0) target = $region9
    $region8: #{tpu_custom_call.1} parent=1 // pred_region
      %20 = dma.done [#allocation3], 128
    $region9: #{tpu_custom_call.1} parent=1 // pred_fallthru
      _
    %v21 = vld [vmem:[#allocation2] sm:$0xff]
    %22 = vrot.lane.b32.xlu0 %v21, 1
    %v23 = vpop.permute.xlu0 %22
    %24 = vst [vmem:[#allocation5] sm:$0xff] %v23
    // Predicated region
    $region10: #{tpu_custom_call.1} parent=1 // pred_check
      _
    $region11: #{tpu_custom_call.1} parent=1 // pred_check_branch
      %26 = sbr.rel (0) target = $region13
    $region12: #{tpu_custom_call.1} parent=1 // pred_region
      %s28 = ssub.s32 128, 128
      %29 = vsyncadd [#allocation4], %s28
      %s31 = sshll.u32 [#allocation5], 4
      %s32 = int_to_ptr.vmem [resolvable:$true] %s31
      %34 = dma.vmem_to_hbm [thread:$0]  %s32, 128, %s1, [#allocation4]
    $region13: #{tpu_custom_call.1} parent=1 // pred_fallthru
      _
    // Predicated region
    $region14: #{tpu_custom_call.1} parent=1 // pred_check
      _
    $region15: #{tpu_custom_call.1} parent=1 // pred_check_branch
      %36 = sbr.rel (0) target = $region17
    $region16: #{tpu_custom_call.1} parent=1 // pred_region
      %37 = dma.done [#allocation4], 128
    $region17: #{tpu_custom_call.1} parent=1 // pred_fallthru
      _
    %38 = vsyncpa [#allocation3], 1
    %39 = vsyncpa [#allocation4], 1

// kernel: tpu_custom_call.1
$region0: #{tpu_custom_call.1}
  #allocation0 [shape = 'u32[]', space=smem, size = 0x4, offset = 0x4, fixed_abs, tag = 'smem constant byte address 0x4 - core index']
  #allocation1 [shape = 'u32[144,128]{1,0:T(1,128)}', space=vmem, size = 0x12000, scoped, tag = 'internal scratch']
  %s0 = inlined_call_operand.vmem [shape: bf16[2,8,64], index: 0, kind: input, shape index: {}]
  %s1 = inlined_call_operand.vmem [shape: bf16[2,8,256], index: 1, kind: input, shape index: {}]
  %s2 = inlined_call_operand.hbm [shape: bf16[64,256], index: 2, kind: input, shape index: {}]
  %s3 = inlined_call_operand.vmem [shape: bf16[8,16], index: 3, kind: input, shape index: {}]
  %s4 = inlined_call_operand.vmem [shape: f32[8,1], index: 4, kind: input, shape index: {}]
  %s5 = inlined_call_operand.vmem [shape: bf16[8,72], index: 5, kind: input, shape index: {}]
  %s6 = inlined_call_operand.vmem [shape: f32[8,1], index: 6, kind: input, shape index: {}]
  %s7 = inlined_call_operand.vmem [shape: bf16[8,24], index: 7, kind: input, shape index: {}]
  %s8 = inlined_call_operand.vmem [shape: f32[8,1], index: 8, kind: input, shape index: {}]
  %s9 = inlined_call_operand.vmem [shape: bf16[8,72], index: 9, kind: input, shape index: {}]
  %s10 = inlined_call_operand.vmem [shape: f32[8,1], index: 10, kind: input, shape index: {}]
  %s11 = inlined_call_operand.hbm [shape: bf16[2,8,256], index: 11, kind: output, shape index: {}]
  %s12 = sld [smem:[#allocation0]]
  $region81: #{tpu_custom_call.1} parent=0
    _
  %s14 = ssub.s32 1, %s12
  %s15 = scalar_select 0, %s14, %s12
  $region1: #{tpu_custom_call.1} parent=0
    #allocation2 [shape = 'u8[32768]{0}', space=vmem, size = 0x8000, scoped, tag = 'input window, operand 2, single buffered']
    #allocation3 [shape = 's32[2]{0}', space=sflag, size = 0x8, scoped, tag = 'scoped memory for tpu_custom_call.1']
    #allocation4 [shape = 's32[2]{0}', space=sflag, size = 0x8, scoped, tag = 'scoped memory for tpu_custom_call.1']
    #allocation5 [shape = 'u8[8192]{0}', space=vmem, size = 0x2000, scoped, tag = 'output window, operand 0']
    %16 = vsyncpa [#allocation3], 0
    %17 = vsyncpa [#allocation4], 0
    %s18 = scalar_lea.sflag [#allocation4], 1
    %19 = vsyncpa %s18, 0
    loop: start=0, step=1, limit=4
    $region2: #{tpu_custom_call.1} parent=1 // loop_pre_header
      _
    $region3: #{tpu_custom_call.1} parent=1 // loop_header
      %s21 = sphi 0, %s25
      %p22 = scmp.ge.s32.totalorder %s21, 4
      %s31 = sphi 0, %s33
      %s34 = sphi 0, %s31
      %s35 = sphi 0, %s34
      %s51 = sphi 0, %s35
      %s57 = sphi 0, %s59
      %s60 = sphi 0, %s57
      %s61 = sphi 0, %s60
      %s77 = sphi 0, %s61
      %s81 = sphi 0, %s81
      %s83 = sphi 0, %s81
      %s84 = sphi 0, %s83
      %s98 = sphi 0, %s84
      %s102 = sphi 0, %s102
      %s104 = sphi 0, %s102
      %s105 = sphi 0, %s104
      %s119 = sphi 0, %s105
      %s123 = sphi 0, %s123
      %s125 = sphi 0, %s123
      %s126 = sphi 0, %s125
      %s140 = sphi 0, %s126
      %s144 = sphi 0, %s144
      %s146 = sphi 0, %s144
      %s147 = sphi 0, %s146
      %s161 = sphi 0, %s147
      %s165 = sphi 0, %s165
      %s167 = sphi 0, %s165
      %s168 = sphi 0, %s167
      %s182 = sphi 0, %s168
      %s186 = sphi 0, %s186
      %s188 = sphi 0, %s186
      %s189 = sphi 0, %s188
      %s203 = sphi 0, %s189
      %s207 = sphi 0, %s207
      %s209 = sphi 0, %s207
      %s210 = sphi 0, %s209
      %s224 = sphi 0, %s210
      %s228 = sphi 0, %s228
      %s230 = sphi 0, %s228
      %s231 = sphi 0, %s230
      %s245 = sphi 0, %s231
      %s249 = sphi 0, %s249
      %s251 = sphi 0, %s249
      %s252 = sphi 0, %s251
      %s266 = sphi 0, %s252
      %s272 = sphi 0, %s274
      %s275 = sphi 0, %s272
      %s276 = sphi 0, %s275
      %s292 = sphi 0, %s276
    $region4: #{tpu_custom_call.1} parent=1 // loop_header_branch
      %24 = sbr.rel (%p22) target = $region8
    $region5: #{tpu_custom_call.1} parent=1 // loop_body
      %s26 = ssub.s32 %s21, 1
      %s27 = ssub.s32 %s21, 2
      %s28 = sadd.s32 %s21, 1
      %s29 = ssub.s32 %s21, %s28
      %p30 = scmp.eq.s32.totalorder %s29, 0
      %s32 = sadd.s32 %s31, 1
      %s33 = scalar_select %p30, %s31, %s32
      %p36 = pneg %p30
      %p37 = scmp.eq.s32.totalorder %s21, 1
      %p38 = por %p36, %p37
      %p39 = scmp.ne.s32.totalorder %s31, %s34
      %p40 = scmp.eq.s32.totalorder %s21, 0
      %p41 = por %p39, %p40
      %p42 = scmp.ne.s32.totalorder %s31, %s34
      %p43 = scmp.eq.s32.totalorder %s26, 1
      %p44 = por %p42, %p43
      %p45 = scmp.ne.s32.totalorder %s34, %s35
      %p46 = scmp.eq.s32.totalorder %s26, 0
      %p47 = por %p45, %p46
      %p48 = scmp.ne.s32.totalorder %s34, %s35
      %p49 = scmp.eq.s32.totalorder %s27, 1
      %p50 = por %p48, %p49
      %p52 = scmp.ne.s32.totalorder %s35, %s51
      %p53 = scmp.eq.s32.totalorder %s27, 0
      %p54 = por %p52, %p53
      %s55 = ssub.s32 %s21, %s28
      %p56 = scmp.eq.s32.totalorder %s55, 0
      %s58 = sadd.s32 %s57, 1
      %s59 = scalar_select %p56, %s57, %s58
      %p62 = pneg %p56
      %p63 = scmp.eq.s32.totalorder %s21, 1
      %p64 = por %p62, %p63
      %p65 = scmp.ne.s32.totalorder %s57, %s60
      %p66 = scmp.eq.s32.totalorder %s21, 0
      %p67 = por %p65, %p66
      %p68 = scmp.ne.s32.totalorder %s57, %s60
      %p69 = scmp.eq.s32.totalorder %s26, 1
      %p70 = por %p68, %p69
      %p71 = scmp.ne.s32.totalorder %s60, %s61
      %p72 = scmp.eq.s32.totalorder %s26, 0
      %p73 = por %p71, %p72
      %p74 = scmp.ne.s32.totalorder %s60, %s61
      %p75 = scmp.eq.s32.totalorder %s27, 1
      %p76 = por %p74, %p75
      %p78 = scmp.ne.s32.totalorder %s61, %s77
      %p79 = scmp.eq.s32.totalorder %s27, 0
      %p80 = por %p78, %p79
      %s82 = sadd.s32 %s81, 1
      %p85 = scmp.eq.s32.totalorder %s21, 1
      %p86 = scmp.ne.s32.totalorder %s81, %s83
      %p87 = scmp.eq.s32.totalorder %s21, 0
      %p88 = por %p86, %p87
      %p89 = scmp.ne.s32.totalorder %s81, %s83
      %p90 = scmp.eq.s32.totalorder %s26, 1
      %p91 = por %p89, %p90
      %p92 = scmp.ne.s32.totalorder %s83, %s84
      %p93 = scmp.eq.s32.totalorder %s26, 0
      %p94 = por %p92, %p93
      %p95 = scmp.ne.s32.totalorder %s83, %s84
      %p96 = scmp.eq.s32.totalorder %s27, 1
      %p97 = por %p95, %p96
      %p99 = scmp.ne.s32.totalorder %s84, %s98
      %p100 = scmp.eq.s32.totalorder %s27, 0
      %p101 = por %p99, %p100
      %s103 = sadd.s32 %s102, 1
      %p106 = scmp.eq.s32.totalorder %s21, 1
      %p107 = scmp.ne.s32.totalorder %s102, %s104
      %p108 = scmp.eq.s32.totalorder %s21, 0
      %p109 = por %p107, %p108
      %p110 = scmp.ne.s32.totalorder %s102, %s104
      %p111 = scmp.eq.s32.totalorder %s26, 1
      %p112 = por %p110, %p111
      %p113 = scmp.ne.s32.totalorder %s104, %s105
      %p114 = scmp.eq.s32.totalorder %s26, 0
      %p115 = por %p113, %p114
      %p116 = scmp.ne.s32.totalorder %s104, %s105
      %p117 = scmp.eq.s32.totalorder %s27, 1
      %p118 = por %p116, %p117
      %p120 = scmp.ne.s32.totalorder %s105, %s119
      %p121 = scmp.eq.s32.totalorder %s27, 0
      %p122 = por %p120, %p121
      %s124 = sadd.s32 %s123, 1
      %p127 = scmp.eq.s32.totalorder %s21, 1
      %p128 = scmp.ne.s32.totalorder %s123, %s125
      %p129 = scmp.eq.s32.totalorder %s21, 0
      %p130 = por %p128, %p129
      %p131 = scmp.ne.s32.totalorder %s123, %s125
      %p132 = scmp.eq.s32.totalorder %s26, 1
      %p133 = por %p131, %p132
      %p134 = scmp.ne.s32.totalorder %s125, %s126
      %p135 = scmp.eq.s32.totalorder %s26, 0
      %p136 = por %p134, %p135
      %p137 = scmp.ne.s32.totalorder %s125, %s126
      %p138 = scmp.eq.s32.totalorder %s27, 1
      %p139 = por %p137, %p138
      %p141 = scmp.ne.s32.totalorder %s126, %s140
      %p142 = scmp.eq.s32.totalorder %s27, 0
      %p143 = por %p141, %p142
      %s145 = sadd.s32 %s144, 1
      %p148 = scmp.eq.s32.totalorder %s21, 1
      %p149 = scmp.ne.s32.totalorder %s144, %s146
      %p150 = scmp.eq.s32.totalorder %s21, 0
      %p151 = por %p149, %p150
      %p152 = scmp.ne.s32.totalorder %s144, %s146
      %p153 = scmp.eq.s32.totalorder %s26, 1
      %p154 = por %p152, %p153
      %p155 = scmp.ne.s32.totalorder %s146, %s147
      %p156 = scmp.eq.s32.totalorder %s26, 0
      %p157 = por %p155, %p156
      %p158 = scmp.ne.s32.totalorder %s146, %s147
      %p159 = scmp.eq.s32.totalorder %s27, 1
      %p160 = por %p158, %p159
      %p162 = scmp.ne.s32.totalorder %s147, %s161
      %p163 = scmp.eq.s32.totalorder %s27, 0
      %p164 = por %p162, %p163
      %s166 = sadd.s32 %s165, 1
      %p169 = scmp.eq.s32.totalorder %s21, 1
      %p170 = scmp.ne.s32.totalorder %s165, %s167
      %p171 = scmp.eq.s32.totalorder %s21, 0
      %p172 = por %p170, %p171
      %p173 = scmp.ne.s32.totalorder %s165, %s167
      %p174 = scmp.eq.s32.totalorder %s26, 1
      %p175 = por %p173, %p174
      %p176 = scmp.ne.s32.totalorder %s167, %s168
      %p177 = scmp.eq.s32.totalorder %s26, 0
      %p178 = por %p176, %p177
      %p179 = scmp.ne.s32.totalorder %s167, %s168
      %p180 = scmp.eq.s32.totalorder %s27, 1
      %p181 = por %p179, %p180
      %p183 = scmp.ne.s32.totalorder %s168, %s182
      %p184 = scmp.eq.s32.totalorder %s27, 0
      %p185 = por %p183, %p184
      %s187 = sadd.s32 %s186, 1
      %p190 = scmp.eq.s32.totalorder %s21, 1
      %p191 = scmp.ne.s32.totalorder %s186, %s188
      %p192 = scmp.eq.s32.totalorder %s21, 0
      %p193 = por %p191, %p192
      %p194 = scmp.ne.s32.totalorder %s186, %s188
      %p195 = scmp.eq.s32.totalorder %s26, 1
      %p196 = por %p194, %p195
      %p197 = scmp.ne.s32.totalorder %s188, %s189
      %p198 = scmp.eq.s32.totalorder %s26, 0
      %p199 = por %p197, %p198
      %p200 = scmp.ne.s32.totalorder %s188, %s189
      %p201 = scmp.eq.s32.totalorder %s27, 1
      %p202 = por %p200, %p201
      %p204 = scmp.ne.s32.totalorder %s189, %s203
      %p205 = scmp.eq.s32.totalorder %s27, 0
      %p206 = por %p204, %p205
      %s208 = sadd.s32 %s207, 1
      %p211 = scmp.eq.s32.totalorder %s21, 1
      %p212 = scmp.ne.s32.totalorder %s207, %s209
      %p213 = scmp.eq.s32.totalorder %s21, 0
      %p214 = por %p212, %p213
      %p215 = scmp.ne.s32.totalorder %s207, %s209
      %p216 = scmp.eq.s32.totalorder %s26, 1
      %p217 = por %p215, %p216
      %p218 = scmp.ne.s32.totalorder %s209, %s210
      %p219 = scmp.eq.s32.totalorder %s26, 0
      %p220 = por %p218, %p219
      %p221 = scmp.ne.s32.totalorder %s209, %s210
      %p222 = scmp.eq.s32.totalorder %s27, 1
      %p223 = por %p221, %p222
      %p225 = scmp.ne.s32.totalorder %s210, %s224
      %p226 = scmp.eq.s32.totalorder %s27, 0
      %p227 = por %p225, %p226
      %s229 = sadd.s32 %s228, 1
      %p232 = scmp.eq.s32.totalorder %s21, 1
      %p233 = scmp.ne.s32.totalorder %s228, %s230
      %p234 = scmp.eq.s32.totalorder %s21, 0
      %p235 = por %p233, %p234
      %p236 = scmp.ne.s32.totalorder %s228, %s230
      %p237 = scmp.eq.s32.totalorder %s26, 1
      %p238 = por %p236, %p237
      %p239 = scmp.ne.s32.totalorder %s230, %s231
      %p240 = scmp.eq.s32.totalorder %s26, 0
      %p241 = por %p239, %p240
      %p242 = scmp.ne.s32.totalorder %s230, %s231
      %p243 = scmp.eq.s32.totalorder %s27, 1
      %p244 = por %p242, %p243
      %p246 = scmp.ne.s32.totalorder %s231, %s245
      %p247 = scmp.eq.s32.totalorder %s27, 0
      %p248 = por %p246, %p247
      %s250 = sadd.s32 %s249, 1
      %p253 = scmp.eq.s32.totalorder %s21, 1
      %p254 = scmp.ne.s32.totalorder %s249, %s251
      %p255 = scmp.eq.s32.totalorder %s21, 0
      %p256 = por %p254, %p255
      %p257 = scmp.ne.s32.totalorder %s249, %s251
      %p258 = scmp.eq.s32.totalorder %s26, 1
      %p259 = por %p257, %p258
      %p260 = scmp.ne.s32.totalorder %s251, %s252
      %p261 = scmp.eq.s32.totalorder %s26, 0
      %p262 = por %p260, %p261
      %p263 = scmp.ne.s32.totalorder %s251, %s252
      %p264 = scmp.eq.s32.totalorder %s27, 1
      %p265 = por %p263, %p264
      %p267 = scmp.ne.s32.totalorder %s252, %s266
      %p268 = scmp.eq.s32.totalorder %s27, 0
      %p269 = por %p267, %p268
      %s270 = ssub.s32 %s21, %s28
      %p271 = scmp.eq.s32.totalorder %s270, 0
      %s273 = sadd.s32 %s272, 1
      %s274 = scalar_select %p271, %s272, %s273
      %p277 = pneg %p271
      %p278 = scmp.eq.s32.totalorder %s21, 1
      %p279 = por %p277, %p278
      %p280 = scmp.ne.s32.totalorder %s272, %s275
      %p281 = scmp.eq.s32.totalorder %s21, 0
      %p282 = por %p280, %p281
      %p283 = scmp.ne.s32.totalorder %s272, %s275
      %p284 = scmp.eq.s32.totalorder %s26, 1
      %p285 = por %p283, %p284
      %p286 = scmp.ne.s32.totalorder %s275, %s276
      %p287 = scmp.eq.s32.totalorder %s26, 0
      %p288 = por %p286, %p287
      %p289 = scmp.ne.s32.totalorder %s275, %s276
      %p290 = scmp.eq.s32.totalorder %s27, 1
      %p291 = por %p289, %p290
      %p293 = scmp.ne.s32.totalorder %s276, %s292
      %p294 = scmp.eq.s32.totalorder %s27, 0
      %p295 = por %p293, %p294
      %p296 = scmp.le.s32.totalorder 1, %s21
      %p297 = scmp.lt.s32.totalorder %s21, 3
      %p298 = pnand %p296, %p297
      %p299 = pneg %p298
      // Predicated region
      $region9: #{tpu_custom_call.1} parent=5 // pred_check
        _
      $region10: #{tpu_custom_call.1} parent=5 // pred_check_branch
        %301 = sbr.rel (%p298) target = $region12
      $region11: #{tpu_custom_call.1} parent=5 // pred_region
        %s302 = ssub.s32 %s21, 1
        // Predicated region
        $region13: #{tpu_custom_call.1} parent=11 // pred_check
          %p303 = pneg %p94
        $region14: #{tpu_custom_call.1} parent=11 // pred_check_branch
          %305 = sbr.rel (%p303) target = $region16
        $region15: #{tpu_custom_call.1} parent=11 // pred_region
          %s307 = ssub.s32 1024, 1024
          %308 = vsyncadd [#allocation3], %s307
          %s309 = sshll.u32 [#allocation2], 4
          %s310 = int_to_ptr.vmem [resolvable:$true] %s309
          %315 = dma.hbm_to_vmem [thread:$0]  %s2, 1024, %s310, [#allocation3], 128, 128, 8
        $region16: #{tpu_custom_call.1} parent=11 // pred_fallthru
          _
        // Predicated region
        $region17: #{tpu_custom_call.1} parent=11 // pred_check
          %p316 = pneg %p115
        $region18: #{tpu_custom_call.1} parent=11 // pred_check_branch
          %318 = sbr.rel (%p316) target = $region20
        $region19: #{tpu_custom_call.1} parent=11 // pred_region
          _
        $region20: #{tpu_custom_call.1} parent=11 // pred_fallthru
          _
        // Predicated region
        $region21: #{tpu_custom_call.1} parent=11 // pred_check
          %p319 = pneg %p136
        $region22: #{tpu_custom_call.1} parent=11 // pred_check_branch
          %321 = sbr.rel (%p319) target = $region24
        $region23: #{tpu_custom_call.1} parent=11 // pred_region
          _
        $region24: #{tpu_custom_call.1} parent=11 // pred_fallthru
          _
        // Predicated region
        $region25: #{tpu_custom_call.1} parent=11 // pred_check
          %p322 = pneg %p157
        $region26: #{tpu_custom_call.1} parent=11 // pred_check_branch
          %324 = sbr.rel (%p322) target = $region28
        $region27: #{tpu_custom_call.1} parent=11 // pred_region
          _
        $region28: #{tpu_custom_call.1} parent=11 // pred_fallthru
          _
        // Predicated region
        $region29: #{tpu_custom_call.1} parent=11 // pred_check
          %p325 = pneg %p178
        $region30: #{tpu_custom_call.1} parent=11 // pred_check_branch
          %327 = sbr.rel (%p325) target = $region32
        $region31: #{tpu_custom_call.1} parent=11 // pred_region
          _
        $region32: #{tpu_custom_call.1} parent=11 // pred_fallthru
          _
        // Predicated region
        $region33: #{tpu_custom_call.1} parent=11 // pred_check
          %p328 = pneg %p199
        $region34: #{tpu_custom_call.1} parent=11 // pred_check_branch
          %330 = sbr.rel (%p328) target = $region36
        $region35: #{tpu_custom_call.1} parent=11 // pred_region
          _
        $region36: #{tpu_custom_call.1} parent=11 // pred_fallthru
          _
        // Predicated region
        $region37: #{tpu_custom_call.1} parent=11 // pred_check
          %p331 = pneg %p220
        $region38: #{tpu_custom_call.1} parent=11 // pred_check_branch
          %333 = sbr.rel (%p331) target = $region40
        $region39: #{tpu_custom_call.1} parent=11 // pred_region
          _
        $region40: #{tpu_custom_call.1} parent=11 // pred_fallthru
          _
        // Predicated region
        $region41: #{tpu_custom_call.1} parent=11 // pred_check
          %p334 = pneg %p241
        $region42: #{tpu_custom_call.1} parent=11 // pred_check_branch
          %336 = sbr.rel (%p334) target = $region44
        $region43: #{tpu_custom_call.1} parent=11 // pred_region
          _
        $region44: #{tpu_custom_call.1} parent=11 // pred_fallthru
          _
        // Predicated region
        $region45: #{tpu_custom_call.1} parent=11 // pred_check
          %p337 = pneg %p262
        $region46: #{tpu_custom_call.1} parent=11 // pred_check_branch
          %339 = sbr.rel (%p337) target = $region48
        $region47: #{tpu_custom_call.1} parent=11 // pred_region
          _
        $region48: #{tpu_custom_call.1} parent=11 // pred_fallthru
          _
      $region12: #{tpu_custom_call.1} parent=5 // pred_fallthru
        _
      %p340 = scmp.lt.s32.totalorder %s21, 2
      // Predicated region
      $region49: #{tpu_custom_call.1} parent=5 // pred_check
        %p341 = pneg %p340
      $region50: #{tpu_custom_call.1} parent=5 // pred_check_branch
        %343 = sbr.rel (%p341) target = $region52
      $region51: #{tpu_custom_call.1} parent=5 // pred_region
        // Predicated region
        $region53: #{tpu_custom_call.1} parent=51 // pred_check
          %p344 = pneg %p41
        $region54: #{tpu_custom_call.1} parent=51 // pred_check_branch
          %346 = sbr.rel (%p344) target = $region56
        $region55: #{tpu_custom_call.1} parent=51 // pred_region
          %p347 = scmp.lt.s32.totalorder %s21, 1
          %s348 = scalar_select %p347, %s21, 1
          %s349 = smul.addr %s348, 4
          %s350 = scalar_lea.vmem %s0, %s349
        $region56: #{tpu_custom_call.1} parent=51 // pred_fallthru
          _
        // Predicated region
        $region57: #{tpu_custom_call.1} parent=51 // pred_check
          %p351 = pneg %p67
        $region58: #{tpu_custom_call.1} parent=51 // pred_check_branch
          %353 = sbr.rel (%p351) target = $region60
        $region59: #{tpu_custom_call.1} parent=51 // pred_region
          %p354 = scmp.lt.s32.totalorder %s21, 1
          %s355 = scalar_select %p354, %s21, 1
          %s356 = smul.addr %s355, 2
          %s357 = smul.addr %s356, 4
          %s358 = scalar_lea.vmem %s1, %s357
        $region60: #{tpu_custom_call.1} parent=51 // pred_fallthru
          _
      $region52: #{tpu_custom_call.1} parent=5 // pred_fallthru
        _
      %p359 = scmp.le.s32.totalorder 1, %s21
      %p360 = scmp.lt.s32.totalorder %s21, 3
      %p361 = pnand %p359, %p360
      %p362 = pneg %p361
      // Predicated region
      $region61: #{tpu_custom_call.1} parent=5 // pred_check
        _
      $region62: #{tpu_custom_call.1} parent=5 // pred_check_branch
        %364 = sbr.rel (%p361) target = $region64
      $region63: #{tpu_custom_call.1} parent=5 // pred_region
        %s365 = ssub.s32 %s21, 1
        // Predicated region
        $region65: #{tpu_custom_call.1} parent=63 // pred_check
          %p366 = pneg %p94
        $region66: #{tpu_custom_call.1} parent=63 // pred_check_branch
          %368 = sbr.rel (%p366) target = $region68
        $region67: #{tpu_custom_call.1} parent=63 // pred_region
          %369 = dma.done [#allocation3], 1024
        $region68: #{tpu_custom_call.1} parent=63 // pred_fallthru
          _
        %p370 = scmp.lt.s32.totalorder %s26, 1
        %s371 = scalar_select %p370, %s26, 1
        %s372 = smul.addr %s371, 4
        %s373 = scalar_lea.vmem %s0, %s372
        %p374 = pneg %p47
        %p375 = pneg %p44
        %p376 = scmp.lt.s32.totalorder %s26, 1
        %s377 = scalar_select %p376, %s26, 1
        %s378 = smul.addr %s377, 2
        %s379 = smul.addr %s378, 4
        %s380 = scalar_lea.vmem %s1, %s379
        %p381 = pneg %p73
        %p382 = pneg %p70
        %p383 = pneg %p94
        %p384 = pneg %p91
        %p385 = pneg %p115
        %p386 = pneg %p112
        %p387 = pneg %p136
        %p388 = pneg %p133
        %p389 = pneg %p157
        %p390 = pneg %p154
        %p391 = pneg %p178
        %p392 = pneg %p175
        %p393 = pneg %p199
        %p394 = pneg %p196
        %p395 = pneg %p220
        %p396 = pneg %p217
        %p397 = pneg %p241
        %p398 = pneg %p238
        %p399 = pneg %p262
        %p400 = pneg %p259
        %p401 = pneg %p288
        %p402 = pneg %p285
        %s403 = sand.u32 %s275, 1
        %s404 = scalar_lea.sflag [#allocation4], %s403
        %s405 = sand.u32 %s275, 1
        %s406 = smul.addr %s405, 8
        %s407 = scalar_lea.vmem [#allocation5], %s406
        %p408 = scmp.lt.s32.totalorder %s26, 1
        %s409 = scalar_select %p408, %s26, 1
        %s410 = smul.addr %s409, 4
        %s411 = scalar_lea.vmem %s0, %s410
        %p412 = scmp.lt.s32.totalorder %s26, 1
        %s413 = scalar_select %p412, %s26, 1
        %s414 = smul.addr %s413, 2
        %s415 = smul.addr %s414, 4
        %s416 = scalar_lea.vmem %s1, %s415
        %v418 = vlaneseq
        %v419 = vand.u32 %v418, 127
        %v420 = vadd.s32 %v419, 128
        %v421 = vand.u32 %v419, 15
        %v422 = vand.u32 %v420, 15
        %vm423 = vcmp.ge.s32.totalorder %v419, 16
        %vm424 = vcmp.ge.s32.totalorder %v420, 16
        %vm425 = vcmp.lt.s32.totalorder %v419, 240
        %vm426 = vcmp.lt.s32.totalorder %v420, 240
        %vm427 = vcmp.ge.s32.totalorder %v421, 1
        %vm428 = vcmp.ge.s32.totalorder %v422, 1
        %vm429 = vcmp.lt.s32.totalorder %v421, 15
        %vm430 = vcmp.lt.s32.totalorder %v422, 15
        %vm431 = vmand %vm423, %vm427
        %vm432 = vmand %vm424, %vm428
        %vm433 = vmand %vm423, %vm429
        %vm434 = vmand %vm424, %vm430
        %vm435 = vmand %vm425, %vm427
        %vm436 = vmand %vm426, %vm428
        %vm437 = vmand %vm425, %vm429
        %vm438 = vmand %vm426, %vm430
        %v439 = vld [vmem:[%s411] sm:$0xf]
        %v440 = vld [vmem:[#allocation2] sm:$0xff]
        %v441 = vld [vmem:[#allocation2 + $0x8] sm:$0xff]
        %v442 = vld [vmem:[#allocation2 + $0x10] sm:$0xff]
        %v443 = vld [vmem:[#allocation2 + $0x18] sm:$0xff]
        %v444 = vld [vmem:[#allocation2 + $0x20] sm:$0xff]
        %v445 = vld [vmem:[#allocation2 + $0x28] sm:$0xff]
        %v446 = vld [vmem:[#allocation2 + $0x30] sm:$0xff]
        %v447 = vld [vmem:[#allocation2 + $0x38] sm:$0xff]
        %v456 = vunpack.c.l.b16 %v440
        %v457 = vunpack.c.h.b16 %v440
        %v458 = vunpack.c.l.b16 %v441
        %v459 = vunpack.c.h.b16 %v441
        %v460 = vunpack.c.l.b16 %v442
        %v461 = vunpack.c.h.b16 %v442
        %v462 = vunpack.c.l.b16 %v443
        %v463 = vunpack.c.h.b16 %v443
        %v464 = vunpack.c.l.b16 %v444
        %v465 = vunpack.c.h.b16 %v444
        %v466 = vunpack.c.l.b16 %v445
        %v467 = vunpack.c.h.b16 %v445
        %v468 = vunpack.c.l.b16 %v446
        %v469 = vunpack.c.h.b16 %v446
        %v470 = vunpack.c.l.b16 %v447
        %v471 = vunpack.c.h.b16 %v447
        %v472 = vpack.c.b16 %v458, %v456
        %v473 = vpack.c.b16 %v459, %v457
        %v474 = vpack.c.b16 %v462, %v460
        %v475 = vpack.c.b16 %v463, %v461
        %v476 = vpack.c.b16 %v466, %v464
        %v477 = vpack.c.b16 %v467, %v465
        %v478 = vpack.c.b16 %v470, %v468
        %v479 = vpack.c.b16 %v471, %v469
        %vm488 = vcmask 523264
        %v490 = vsel %vm488, %v439, 0
        %492 = vmatprep.subr.bf16.mxu0 %v473
        %493 = vmatpush1.bf16.msra.mxu0 %v472
        %494 = vmatprep.subr.bf16.mxu0 %v475
        %495 = vmatpush1.bf16.msra.mxu0 %v474
        %496 = vmatprep.subr.bf16.mxu0 %v477
        %497 = vmatpush1.bf16.msra.mxu0 %v476
        %498 = vmatprep.subr.bf16.mxu0 %v479
        %499 = vmatpush1.bf16.msra.mxu0 %v478
        %500 = vmatprep.subr.bf16.mxu0 0
        %501 = vmatpush1.bf16.msra.mxu0 0
        %502 = vmatprep.subr.bf16.mxu0 0
        %503 = vmatpush1.bf16.msra.mxu0 0
        %504 = vmatprep.subr.bf16.mxu0 0
        %505 = vmatpush1.bf16.msra.mxu0 0
        %506 = vmatprep.subr.bf16.mxu0 0
        %507 = vmatpush1.bf16.msra.mxu0 0
        %508 = vmatprep.subr.bf16.mxu0 0
        %509 = vmatpush1.bf16.msra.mxu0 0
        %510 = vmatprep.subr.bf16.mxu0 0
        %511 = vmatpush1.bf16.msra.mxu0 0
        %512 = vmatprep.subr.bf16.mxu0 0
        %513 = vmatpush1.bf16.msra.mxu0 0
        %514 = vmatprep.subr.bf16.mxu0 0
        %515 = vmatpush1.bf16.msra.mxu0 0
        %516 = vmatprep.subr.bf16.mxu0 0
        %517 = vmatpush1.bf16.msra.mxu0 0
        %518 = vmatprep.subr.bf16.mxu0 0
        %519 = vmatpush1.bf16.msra.mxu0 0
        %520 = vmatprep.subr.bf16.mxu0 0
        %521 = vmatpush1.bf16.msra.mxu0 0
        %522 = vmatprep.subr.bf16.mxu0 0
        %523 = vmatpush1.bf16.msra.mxu0 0
        %524 = vmatprep.mubr.bf16.mxu0 0
        %525 = vmatmul.mubr.bf16.gmra.mrb[0].mxu0 %v490
        %v526 = vpop.f32.mrb[0].mxu0
        %v527 = vadd.f32 0.0, %v526
        %v528 = vpop.f32.mrb[0].mxu0
        %v529 = vadd.f32 0.0, %v528
        %v530 = vpop.f32.mrb[0].mxu0
        %v531 = vpop.f32.mrb[0].mxu0
        %532 = vdwg.mxu0
        %v533 = vld [vmem:[%s416] sm:$0xff]
        %v534 = vunpack.c.l.bf16 %v533
        %v535 = vunpack.c.h.bf16 %v533
        %v536 = vpack.c.bf16 %v534, %v527
        %v537 = vpack.c.bf16 %v535, %v529
        %v538 = vld [vmem:[%s3] sm:$0xf]
        %v539 = vld [vmem:[%s4] sm:$0xff]
        %541 = vset.pattern.permute.xlu0 0
        %542 = vperm.xlu0 %541, %v539
        %v543 = vpop.permute.xlu0 %542
        %vm545 = vcmask 130048
        %v547 = vsel %vm545, %v538, 0
        %549 = vmatprep.subr.bf16.mxu0 %v537
        %550 = vmatpush1.bf16.msra.mxu0 %v536
        %551 = vmatprep.subr.bf16.mxu0 0
        %552 = vmatpush1.bf16.msra.mxu0 0
        %553 = vmatprep.subr.bf16.mxu0 0
        %554 = vmatpush1.bf16.msra.mxu0 0
        %555 = vmatprep.subr.bf16.mxu0 0
        %556 = vmatpush1.bf16.msra.mxu0 0
        %557 = vmatprep.subr.bf16.mxu0 0
        %558 = vmatpush1.bf16.msra.mxu0 0
        %559 = vmatprep.subr.bf16.mxu0 0
        %560 = vmatpush1.bf16.msra.mxu0 0
        %561 = vmatprep.subr.bf16.mxu0 0
        %562 = vmatpush1.bf16.msra.mxu0 0
        %563 = vmatprep.subr.bf16.mxu0 0
        %564 = vmatpush1.bf16.msra.mxu0 0
        %565 = vmatprep.subr.bf16.mxu0 0
        %566 = vmatpush1.bf16.msra.mxu0 0
        %567 = vmatprep.subr.bf16.mxu0 0
        %568 = vmatpush1.bf16.msra.mxu0 0
        %569 = vmatprep.subr.bf16.mxu0 0
        %570 = vmatpush1.bf16.msra.mxu0 0
        %571 = vmatprep.subr.bf16.mxu0 0
        %572 = vmatpush1.bf16.msra.mxu0 0
        %573 = vmatprep.subr.bf16.mxu0 0
        %574 = vmatpush1.bf16.msra.mxu0 0
        %575 = vmatprep.subr.bf16.mxu0 0
        %576 = vmatpush1.bf16.msra.mxu0 0
        %577 = vmatprep.subr.bf16.mxu0 0
        %578 = vmatpush1.bf16.msra.mxu0 0
        %579 = vmatprep.subr.bf16.mxu0 0
        %580 = vmatpush1.bf16.msra.mxu0 0
        %581 = vmatprep.mubr.bf16.mxu0 0
        %582 = vmatmul.mubr.bf16.gmra.mrb[0].mxu0 %v547
        %v583 = vpop.f32.mrb[0].mxu0
        %v584 = vadd.f32 %v543, %v583
        %v585 = vpop.f32.mrb[0].mxu0
        %v586 = vadd.f32 %v543, %v585
        %v587 = vpop.f32.mrb[0].mxu0
        %v588 = vpop.f32.mrb[0].mxu0
        %589 = vdwg.mxu0
        %592 = vrot.lane.b32.xlu0 %v584, 17
        %v593 = vpop.permute.xlu0 %592
        %594 = vrot.lane.b32.xlu0 %v586, 17
        %v595 = vpop.permute.xlu0 %594
        %vm596 = vcmask 138240
        %v597 = vsel %vm596, %v593, %v595
        %v600 = vsel %vm596, 0.0, %v593
        %v601 = vsel %vm431, %v600, 0.0
        %v602 = vsel %vm432, %v597, 0.0
        %603 = vrot.lane.b32.xlu0 %v584, 16
        %v604 = vpop.permute.xlu0 %603
        %605 = vrot.lane.b32.xlu0 %v586, 16
        %v606 = vpop.permute.xlu0 %605
        %v607 = vsel %vm545, %v604, %v606
        %v610 = vsel %vm545, 0.0, %v604
        %v611 = vsel %vm423, %v610, 0.0
        %v612 = vsel %vm424, %v607, 0.0
        %613 = vrot.lane.b32.xlu0 %v584, 15
        %v614 = vpop.permute.xlu0 %613
        %615 = vrot.lane.b32.xlu0 %v586, 15
        %v616 = vpop.permute.xlu0 %615
        %vm617 = vcmask 121856
        %v618 = vsel %vm617, %v614, %v616
        %v621 = vsel %vm617, 0.0, %v614
        %v622 = vsel %vm433, %v621, 0.0
        %v623 = vsel %vm434, %v618, 0.0
        %624 = vrot.lane.b32.xlu0 %v584, 1
        %v625 = vpop.permute.xlu0 %624
        %626 = vrot.lane.b32.xlu0 %v586, 1
        %v627 = vpop.permute.xlu0 %626
        %vm628 = vcmask 7168
        %v629 = vsel %vm628, %v625, %v627
        %v632 = vsel %vm628, 0.0, %v625
        %v633 = vsel %vm427, %v632, 0.0
        %v634 = vsel %vm428, %v629, 0.0
        %635 = vrot.lane.b32.xlu0 %v584, 127
        %v636 = vpop.permute.xlu0 %635
        %637 = vrot.lane.b32.xlu0 %v586, 127
        %v638 = vpop.permute.xlu0 %637
        %vm639 = vcmask 1039360
        %v640 = vsel %vm639, %v636, %v638
        %v643 = vsel %vm639, %v638, 0.0
        %v644 = vsel %vm429, %v640, 0.0
        %v645 = vsel %vm430, %v643, 0.0
        %646 = vrot.lane.b32.xlu0 %v584, 113
        %v647 = vpop.permute.xlu0 %646
        %648 = vrot.lane.b32.xlu0 %v586, 113
        %v649 = vpop.permute.xlu0 %648
        %vm650 = vcmask 924672
        %v651 = vsel %vm650, %v647, %v649
        %v654 = vsel %vm650, %v649, 0.0
        %v655 = vsel %vm435, %v651, 0.0
        %v656 = vsel %vm436, %v654, 0.0
        %657 = vrot.lane.b32.xlu0 %v584, 112
        %v658 = vpop.permute.xlu0 %657
        %659 = vrot.lane.b32.xlu0 %v586, 112
        %v660 = vpop.permute.xlu0 %659
        %vm661 = vcmask 916480
        %v662 = vsel %vm661, %v658, %v660
        %v665 = vsel %vm661, %v660, 0.0
        %v666 = vsel %vm425, %v662, 0.0
        %v667 = vsel %vm426, %v665, 0.0
        %668 = vrot.lane.b32.xlu0 %v584, 111
        %v669 = vpop.permute.xlu0 %668
        %670 = vrot.lane.b32.xlu0 %v586, 111
        %v671 = vpop.permute.xlu0 %670
        %vm672 = vcmask 908288
        %v673 = vsel %vm672, %v669, %v671
        %v676 = vsel %vm672, %v671, 0.0
        %v677 = vsel %vm437, %v673, 0.0
        %v678 = vsel %vm438, %v676, 0.0
        %v679 = vpack.c.bf16 %v611, %v601
        %v680 = vpack.c.bf16 %v612, %v602
        %v681 = vpack.c.bf16 %v633, %v622
        %v682 = vpack.c.bf16 %v634, %v623
        %v683 = vpack.c.bf16 %v644, %v584
        %v684 = vpack.c.bf16 %v645, %v586
        %v685 = vpack.c.bf16 %v666, %v655
        %v686 = vpack.c.bf16 %v667, %v656
        %v687 = vpack.c.bf16 %v677, %v677
        %v688 = vpack.c.bf16 %v678, %v678
        %v689 = vld [vmem:[%s5] sm:$0xf]
        %v690 = vld [vmem:[%s6] sm:$0xff]
        %692 = vset.pattern.permute.xlu0 0
        %693 = vperm.xlu0 %692, %v690
        %v694 = vpop.permute.xlu0 %693
        %vm696 = vcmask 588800
        %v698 = vsel %vm696, %v689, 0
        %vm700 = vcmask 1043456
        %v702 = vsel %vm700, %v687, 0
        %v705 = vsel %vm700, %v688, 0
        %707 = vmatprep.subr.bf16.mxu0 %v680
        %708 = vmatpush1.bf16.msra.mxu0 %v679
        %709 = vmatprep.subr.bf16.mxu0 %v682
        %710 = vmatpush1.bf16.msra.mxu0 %v681
        %711 = vmatprep.subr.bf16.mxu0 %v684
        %712 = vmatpush1.bf16.msra.mxu0 %v683
        %713 = vmatprep.subr.bf16.mxu0 %v686
        %714 = vmatpush1.bf16.msra.mxu0 %v685
        %715 = vmatprep.subr.bf16.mxu0 %v705
        %716 = vmatpush1.bf16.msra.mxu0 %v702
        %717 = vmatprep.subr.bf16.mxu0 0
        %718 = vmatpush1.bf16.msra.mxu0 0
        %719 = vmatprep.subr.bf16.mxu0 0
        %720 = vmatpush1.bf16.msra.mxu0 0
        %721 = vmatprep.subr.bf16.mxu0 0
        %722 = vmatpush1.bf16.msra.mxu0 0
        %723 = vmatprep.subr.bf16.mxu0 0
        %724 = vmatpush1.bf16.msra.mxu0 0
        %725 = vmatprep.subr.bf16.mxu0 0
        %726 = vmatpush1.bf16.msra.mxu0 0
        %727 = vmatprep.subr.bf16.mxu0 0
        %728 = vmatpush1.bf16.msra.mxu0 0
        %729 = vmatprep.subr.bf16.mxu0 0
        %730 = vmatpush1.bf16.msra.mxu0 0
        %731 = vmatprep.subr.bf16.mxu0 0
        %732 = vmatpush1.bf16.msra.mxu0 0
        %733 = vmatprep.subr.bf16.mxu0 0
        %734 = vmatpush1.bf16.msra.mxu0 0
        %735 = vmatprep.subr.bf16.mxu0 0
        %736 = vmatpush1.bf16.msra.mxu0 0
        %737 = vmatprep.subr.bf16.mxu0 0
        %738 = vmatpush1.bf16.msra.mxu0 0
        %739 = vmatprep.mubr.bf16.mxu0 0
        %740 = vmatmul.mubr.bf16.gmra.mrb[0].mxu0 %v698
        %v741 = vpop.f32.mrb[0].mxu0
        %v742 = vadd.f32 %v694, %v741
        %v743 = vpop.f32.mrb[0].mxu0
        %v744 = vadd.f32 %v694, %v743
        %v745 = vpop.f32.mrb[0].mxu0
        %v746 = vpop.f32.mrb[0].mxu0
        %747 = vdwg.mxu0
        %vm748 = vcmp.gt.f32.partialorder %v742, 0.0
        %vm749 = vcmp.gt.f32.partialorder %v744, 0.0
        %v750 = vmul.f32 %v742, 0.01
        %v751 = vmul.f32 %v744, 0.01
        %v752 = vsel %vm748, %v742, %v750
        %v753 = vsel %vm749, %v744, %v751
        %v754 = vpack.c.bf16 %v752, %v752
        %v755 = vpack.c.bf16 %v753, %v753
        %v756 = vld [vmem:[%s7] sm:$0xf]
        %v757 = vld [vmem:[%s8] sm:$0xff]
        %759 = vset.pattern.permute.xlu0 0
        %760 = vperm.xlu0 %759, %v757
        %v761 = vpop.permute.xlu0 %760
        %vm763 = vcmask 195584
        %v765 = vsel %vm763, %v756, 0
        %v768 = vsel %vm700, %v754, 0
        %v771 = vsel %vm700, %v755, 0
        %773 = vmatprep.subr.bf16.mxu0 %v537
        %774 = vmatpush1.bf16.msra.mxu0 %v536
        %775 = vmatprep.subr.bf16.mxu0 %v771
        %776 = vmatpush1.bf16.msra.mxu0 %v768
        %777 = vmatprep.subr.bf16.mxu0 0
        %778 = vmatpush1.bf16.msra.mxu0 0
        %779 = vmatprep.subr.bf16.mxu0 0
        %780 = vmatpush1.bf16.msra.mxu0 0
        %781 = vmatprep.subr.bf16.mxu0 0
        %782 = vmatpush1.bf16.msra.mxu0 0
        %783 = vmatprep.subr.bf16.mxu0 0
        %784 = vmatpush1.bf16.msra.mxu0 0
        %785 = vmatprep.subr.bf16.mxu0 0
        %786 = vmatpush1.bf16.msra.mxu0 0
        %787 = vmatprep.subr.bf16.mxu0 0
        %788 = vmatpush1.bf16.msra.mxu0 0
        %789 = vmatprep.subr.bf16.mxu0 0
        %790 = vmatpush1.bf16.msra.mxu0 0
        %791 = vmatprep.subr.bf16.mxu0 0
        %792 = vmatpush1.bf16.msra.mxu0 0
        %793 = vmatprep.subr.bf16.mxu0 0
        %794 = vmatpush1.bf16.msra.mxu0 0
        %795 = vmatprep.subr.bf16.mxu0 0
        %796 = vmatpush1.bf16.msra.mxu0 0
        %797 = vmatprep.subr.bf16.mxu0 0
        %798 = vmatpush1.bf16.msra.mxu0 0
        %799 = vmatprep.subr.bf16.mxu0 0
        %800 = vmatpush1.bf16.msra.mxu0 0
        %801 = vmatprep.subr.bf16.mxu0 0
        %802 = vmatpush1.bf16.msra.mxu0 0
        %803 = vmatprep.subr.bf16.mxu0 0
        %804 = vmatpush1.bf16.msra.mxu0 0
        %805 = vmatprep.mubr.bf16.mxu0 0
        %806 = vmatmul.mubr.bf16.gmra.mrb[0].mxu0 %v765
        %v807 = vpop.f32.mrb[0].mxu0
        %v808 = vadd.f32 %v761, %v807
        %v809 = vpop.f32.mrb[0].mxu0
        %v810 = vadd.f32 %v761, %v809
        %v811 = vpop.f32.mrb[0].mxu0
        %v812 = vpop.f32.mrb[0].mxu0
        %813 = vdwg.mxu0
        %816 = vrot.lane.b32.xlu0 %v808, 17
        %v817 = vpop.permute.xlu0 %816
        %818 = vrot.lane.b32.xlu0 %v810, 17
        %v819 = vpop.permute.xlu0 %818
        %v820 = vsel %vm596, %v817, %v819
        %v823 = vsel %vm596, 0.0, %v817
        %v824 = vsel %vm431, %v823, 0.0
        %v825 = vsel %vm432, %v820, 0.0
        %826 = vrot.lane.b32.xlu0 %v808, 16
        %v827 = vpop.permute.xlu0 %826
        %828 = vrot.lane.b32.xlu0 %v810, 16
        %v829 = vpop.permute.xlu0 %828
        %v830 = vsel %vm545, %v827, %v829
        %v833 = vsel %vm545, 0.0, %v827
        %v834 = vsel %vm423, %v833, 0.0
        %v835 = vsel %vm424, %v830, 0.0
        %836 = vrot.lane.b32.xlu0 %v808, 15
        %v837 = vpop.permute.xlu0 %836
        %838 = vrot.lane.b32.xlu0 %v810, 15
        %v839 = vpop.permute.xlu0 %838
        %v840 = vsel %vm617, %v837, %v839
        %v843 = vsel %vm617, 0.0, %v837
        %v844 = vsel %vm433, %v843, 0.0
        %v845 = vsel %vm434, %v840, 0.0
        %846 = vrot.lane.b32.xlu0 %v808, 1
        %v847 = vpop.permute.xlu0 %846
        %848 = vrot.lane.b32.xlu0 %v810, 1
        %v849 = vpop.permute.xlu0 %848
        %v850 = vsel %vm628, %v847, %v849
        %v853 = vsel %vm628, 0.0, %v847
        %v854 = vsel %vm427, %v853, 0.0
        %v855 = vsel %vm428, %v850, 0.0
        %856 = vrot.lane.b32.xlu0 %v808, 127
        %v857 = vpop.permute.xlu0 %856
        %858 = vrot.lane.b32.xlu0 %v810, 127
        %v859 = vpop.permute.xlu0 %858
        %v860 = vsel %vm639, %v857, %v859
        %v863 = vsel %vm639, %v859, 0.0
        %v864 = vsel %vm429, %v860, 0.0
        %v865 = vsel %vm430, %v863, 0.0
        %866 = vrot.lane.b32.xlu0 %v808, 113
        %v867 = vpop.permute.xlu0 %866
        %868 = vrot.lane.b32.xlu0 %v810, 113
        %v869 = vpop.permute.xlu0 %868
        %v870 = vsel %vm650, %v867, %v869
        %v873 = vsel %vm650, %v869, 0.0
        %v874 = vsel %vm435, %v870, 0.0
        %v875 = vsel %vm436, %v873, 0.0
        %876 = vrot.lane.b32.xlu0 %v808, 112
        %v877 = vpop.permute.xlu0 %876
        %878 = vrot.lane.b32.xlu0 %v810, 112
        %v879 = vpop.permute.xlu0 %878
        %v880 = vsel %vm661, %v877, %v879
        %v883 = vsel %vm661, %v879, 0.0
        %v884 = vsel %vm425, %v880, 0.0
        %v885 = vsel %vm426, %v883, 0.0
        %886 = vrot.lane.b32.xlu0 %v808, 111
        %v887 = vpop.permute.xlu0 %886
        %888 = vrot.lane.b32.xlu0 %v810, 111
        %v889 = vpop.permute.xlu0 %888
        %v890 = vsel %vm672, %v887, %v889
        %v893 = vsel %vm672, %v889, 0.0
        %v894 = vsel %vm437, %v890, 0.0
        %v895 = vsel %vm438, %v893, 0.0
        %v896 = vpack.c.bf16 %v834, %v824
        %v897 = vpack.c.bf16 %v835, %v825
        %v898 = vpack.c.bf16 %v854, %v844
        %v899 = vpack.c.bf16 %v855, %v845
        %v900 = vpack.c.bf16 %v864, %v808
        %v901 = vpack.c.bf16 %v865, %v810
        %v902 = vpack.c.bf16 %v884, %v874
        %v903 = vpack.c.bf16 %v885, %v875
        %v904 = vpack.c.bf16 %v894, %v894
        %v905 = vpack.c.bf16 %v895, %v895
        %v906 = vld [vmem:[%s9] sm:$0xf]
        %v907 = vld [vmem:[%s10] sm:$0xff]
        %909 = vset.pattern.permute.xlu0 0
        %910 = vperm.xlu0 %909, %v907
        %v911 = vpop.permute.xlu0 %910
        %v914 = vsel %vm696, %v906, 0
        %v917 = vsel %vm700, %v904, 0
        %v920 = vsel %vm700, %v905, 0
        %922 = vmatprep.subr.bf16.mxu0 %v897
        %923 = vmatpush1.bf16.msra.mxu0 %v896
        %924 = vmatprep.subr.bf16.mxu0 %v899
        %925 = vmatpush1.bf16.msra.mxu0 %v898
        %926 = vmatprep.subr.bf16.mxu0 %v901
        %927 = vmatpush1.bf16.msra.mxu0 %v900
        %928 = vmatprep.subr.bf16.mxu0 %v903
        %929 = vmatpush1.bf16.msra.mxu0 %v902
        %930 = vmatprep.subr.bf16.mxu0 %v920
        %931 = vmatpush1.bf16.msra.mxu0 %v917
        %932 = vmatprep.subr.bf16.mxu0 0
        %933 = vmatpush1.bf16.msra.mxu0 0
        %934 = vmatprep.subr.bf16.mxu0 0
        %935 = vmatpush1.bf16.msra.mxu0 0
        %936 = vmatprep.subr.bf16.mxu0 0
        %937 = vmatpush1.bf16.msra.mxu0 0
        %938 = vmatprep.subr.bf16.mxu0 0
        %939 = vmatpush1.bf16.msra.mxu0 0
        %940 = vmatprep.subr.bf16.mxu0 0
        %941 = vmatpush1.bf16.msra.mxu0 0
        %942 = vmatprep.subr.bf16.mxu0 0
        %943 = vmatpush1.bf16.msra.mxu0 0
        %944 = vmatprep.subr.bf16.mxu0 0
        %945 = vmatpush1.bf16.msra.mxu0 0
        %946 = vmatprep.subr.bf16.mxu0 0
        %947 = vmatpush1.bf16.msra.mxu0 0
        %948 = vmatprep.subr.bf16.mxu0 0
        %949 = vmatpush1.bf16.msra.mxu0 0
        %950 = vmatprep.subr.bf16.mxu0 0
        %951 = vmatpush1.bf16.msra.mxu0 0
        %952 = vmatprep.subr.bf16.mxu0 0
        %953 = vmatpush1.bf16.msra.mxu0 0
        %954 = vmatprep.mubr.bf16.mxu0 0
        %955 = vmatmul.mubr.bf16.gmra.mrb[0].mxu0 %v914
        %v956 = vpop.f32.mrb[0].mxu0
        %v957 = vadd.f32 %v911, %v956
        %v958 = vpop.f32.mrb[0].mxu0
        %v959 = vadd.f32 %v911, %v958
        %v960 = vpop.f32.mrb[0].mxu0
        %v961 = vpop.f32.mrb[0].mxu0
        %962 = vdwg.mxu0
        %vm963 = vcmp.gt.f32.partialorder %v957, 0.0
        %vm964 = vcmp.gt.f32.partialorder %v959, 0.0
        %v965 = vmul.f32 %v957, 0.01
        %v966 = vmul.f32 %v959, 0.01
        %v967 = vsel %vm963, %v957, %v965
        %v968 = vsel %vm964, %v959, %v966
        %v969 = vpack.c.bf16 %v967, %v967
        %v970 = vpack.c.bf16 %v968, %v968
        %v973 = vunpack.c.l.b16 %v969
        %v974 = vunpack.c.l.b16 %v970
        %v975 = vpack.c.b16 %v974, %v973
        %977 = vst [vmem:[%s407] sm:$0xff] %v975
        %s978 = sand.u32 %s275, 1
        %s979 = scalar_lea.sflag [#allocation4], %s978
        %s980 = sand.u32 %s275, 1
        %s981 = smul.addr %s980, 8
        %s982 = scalar_lea.vmem [#allocation5], %s981
        // Predicated region
        $region69: #{tpu_custom_call.1} parent=63 // pred_check
          %p983 = pneg %p285
        $region70: #{tpu_custom_call.1} parent=63 // pred_check_branch
          %985 = sbr.rel (%p983) target = $region72
        $region71: #{tpu_custom_call.1} parent=63 // pred_region
          %s987 = ssub.s32 128, 128
          %988 = vsyncadd %s979, %s987
          %s989 = smul.addr %s26, 2
          %s990 = smul.addr %s989, 64
          %s991 = scalar_lea.hbm %s11, %s990
          %s993 = sshll.u32 %s982, 4
          %s994 = int_to_ptr.vmem [resolvable:$true] %s993
          %996 = dma.vmem_to_hbm [thread:$0]  %s994, 128, %s991, %s979
        $region72: #{tpu_custom_call.1} parent=63 // pred_fallthru
          _
      $region64: #{tpu_custom_call.1} parent=5 // pred_fallthru
        _
      %p997 = scmp.le.s32.totalorder 2, %s21
      // Predicated region
      $region73: #{tpu_custom_call.1} parent=5 // pred_check
        %p998 = pneg %p997
      $region74: #{tpu_custom_call.1} parent=5 // pred_check_branch
        %1000 = sbr.rel (%p998) target = $region76
      $region75: #{tpu_custom_call.1} parent=5 // pred_region
        %s1001 = ssub.s32 %s21, 2
        // Predicated region
        $region77: #{tpu_custom_call.1} parent=75 // pred_check
          %p1002 = pneg %p291
        $region78: #{tpu_custom_call.1} parent=75 // pred_check_branch
          %1004 = sbr.rel (%p1002) target = $region80
        $region79: #{tpu_custom_call.1} parent=75 // pred_region
          %s1005 = sand.u32 %s276, 1
          %s1006 = scalar_lea.sflag [#allocation4], %s1005
          %s1007 = sand.u32 %s276, 1
          %s1008 = smul.addr %s1007, 8
          %s1009 = scalar_lea.vmem [#allocation5], %s1008
          %1010 = dma.done %s1006, 128
        $region80: #{tpu_custom_call.1} parent=75 // pred_fallthru
          _
      $region76: #{tpu_custom_call.1} parent=5 // pred_fallthru
        _
    $region6: #{tpu_custom_call.1} parent=1 // loop_footer
      %s25 = sadd.s32 1, %s21
    $region7: #{tpu_custom_call.1} parent=1 // loop_footer_branch
      %20 = sbr.rel target = $region3
    $region8: #{tpu_custom_call.1} parent=1 // loop_exit
      _
    %1011 = vsyncpa [#allocation3], 1
    %s1012 = scalar_lea.sflag [#allocation3], 1
    %1013 = vsyncpa %s1012, 1
    %1014 = vsyncpa [#allocation4], 1
    %s1015 = scalar_lea.sflag [#allocation4], 1
    %1016 = vsyncpa %s1015, 1

</llo_original>
